<compile_context>
chip_gen: v5e
topology: v5e:2x2
jax: 0.10.0
libtpu: 0.0.40
codegen_flags: <defaults>
</compile_context>

<pallas_src>
import jax
import jax.numpy as jnp
from jax.experimental import pallas as pl
from jax.experimental.pallas import tpu as pltpu

LANE = 128
SUB = 8
VMEM_LIMIT = 48 * 1024 * 1024  # safe on v5e/v6e (128 MiB) and v7x (64 MiB)


def _rup(x, m):
    return (x + m - 1) // m * m


# ---------------------------------------------------------------------------
# Pallas kernels
# ---------------------------------------------------------------------------
def _matmul_stats_kernel(p_ref, w_ref, acts_ref, stats_ref):
    """Pass 1: conv-as-matmul + per-channel sum / sum-of-squares accumulation.

    p_ref:     (tm, Kpad)   im2col patches tile
    w_ref:     (Kpad, Npad) reshaped/padded conv weight (resident across grid)
    acts_ref:  (tm, Npad)   pre-BN activations (written per tile)
    stats_ref: (8, Npad)    row 0 = sum, row 1 = sum of squares (accumulator,
                            same block for every grid step -> "arbitrary" axis)
    """
    i = pl.program_id(0)
    acc = jnp.dot(p_ref[...], w_ref[...], preferred_element_type=jnp.float32)
    acts_ref[...] = acc

    @pl.when(i == 0)
    def _():
        stats_ref[...] = jnp.zeros_like(stats_ref)

    stats_ref[0:1, :] += jnp.sum(acc, axis=0, keepdims=True)
    stats_ref[1:2, :] += jnp.sum(acc * acc, axis=0, keepdims=True)


def _bn_relu_kernel(a_ref, scale_ref, shift_ref, o_ref):
    """Pass 2: y = relu(acts * scale + shift) — BN folded into one FMA."""
    o_ref[...] = jnp.maximum(a_ref[...] * scale_ref[...] + shift_ref[...], 0.0)


def _linear_kernel(x_ref, w_ref, b_ref, o_ref):
    """Final Linear: (tb, Fpad) @ (Fpad, Npad) + bias."""
    o_ref[...] = (
        jnp.dot(x_ref[...], w_ref[...], preferred_element_type=jnp.float32)
        + b_ref[...]
    )


# ---------------------------------------------------------------------------
# Plain-JAX glue
# ---------------------------------------------------------------------------
def conv2d_size_out(size, kernel_size=5, stride=2):
    return (size - (kernel_size - 1) - 1) // stride + 1


def im2col_nhwc(x, k=5, s=2):
    """x: (B, H, W, C) -> patches (B*Ho*Wo, k*k*C) with (kh, kw, cin) order."""
    B, H, W, C = x.shape
    Ho = (H - k) // s + 1
    Wo = (W - k) // s + 1
    cols = []
    for i in range(k):
        for j in range(k):
            cols.append(x[:, i:i + s * Ho:s, j:j + s * Wo:s, :])
    cols = jnp.stack(cols, axis=3)                      # (B, Ho, Wo, k*k, C)
    return cols.reshape(B * Ho * Wo, k * k * C), Ho, Wo


def conv_block(x, w, gamma, beta, eps=1e-5):
    """conv(5x5, stride 2, valid) + BatchNorm2d(train stats) + ReLU, NHWC.

    The conv bias is per-channel and is exactly cancelled by the train-mode BN
    mean subtraction, so it is dropped from the kernel (output identical).
    """
    B = x.shape[0]
    Cout = w.shape[0]
    k, s = 5, 2

    patches, Ho, Wo = im2col_nhwc(x, k, s)              # (M, K)
    M, K = patches.shape

    Np = _rup(Cout, LANE)
    Kp = _rup(K, SUB)
    if Kp < LANE:
        Kp = LANE
    tm = min(512, _rup(M, SUB))
    Mp = _rup(M, tm)

    patches = jnp.pad(patches, ((0, Mp - M), (0, Kp - K)))
    # (Cout, Cin, kh, kw) -> (kh, kw, Cin, Cout) -> (K, Cout), matching patches.
    w2d = jnp.transpose(w, (2, 3, 1, 0)).reshape(K, Cout)
    w2d = jnp.pad(w2d, ((0, Kp - K), (0, Np - Cout)))

    grid = (Mp // tm,)

    acts, stats = pl.pallas_call(
        _matmul_stats_kernel,
        out_shape=(jax.ShapeDtypeStruct((Mp, Np), jnp.float32),
                   jax.ShapeDtypeStruct((SUB, Np), jnp.float32)),
        grid=grid,
        in_specs=[pl.BlockSpec((tm, Kp), lambda i: (i, 0)),
                  pl.BlockSpec((Kp, Np), lambda i: (0, 0))],
        out_specs=(pl.BlockSpec((tm, Np), lambda i: (i, 0)),
                   pl.BlockSpec((SUB, Np), lambda i: (0, 0))),
        compiler_params=pltpu.CompilerParams(
            dimension_semantics=("arbitrary",),   # stats accumulate across M
            vmem_limit_bytes=VMEM_LIMIT),
    )(patches, w2d)

    # Fold BN into one scale/shift (biased variance, matching PyTorch train).
    # Padded-M rows are zero and contribute nothing; divide by the true M.
    mean = stats[0] / M
    var = jnp.maximum(stats[1] / M - mean * mean, 0.0)
    gamma_p = jnp.pad(gamma, (0, Np - Cout))
    beta_p = jnp.pad(beta, (0, Np - Cout))
    scale = jax.lax.rsqrt(var + eps) * gamma_p
    shift = beta_p - mean * scale

    out = pl.pallas_call(
        _bn_relu_kernel,
        out_shape=jax.ShapeDtypeStruct((Mp, Np), jnp.float32),
        grid=grid,
        in_specs=[pl.BlockSpec((tm, Np), lambda i: (i, 0)),
                  pl.BlockSpec((1, Np), lambda i: (0, 0)),
                  pl.BlockSpec((1, Np), lambda i: (0, 0))],
        out_specs=pl.BlockSpec((tm, Np), lambda i: (i, 0)),
        compiler_params=pltpu.CompilerParams(
            dimension_semantics=("parallel",),
            vmem_limit_bytes=VMEM_LIMIT),
    )(acts, scale.reshape(1, Np), shift.reshape(1, Np))

    return out[:M, :Cout].reshape(B, Ho, Wo, Cout)


def linear(x, w2d, bias):
    """x: (B, F), w2d: (F, N), bias: (N,) -> (B, N); padded to lane-dense."""
    B, F = x.shape
    N = w2d.shape[1]
    Np = _rup(N, LANE)
    Fp = _rup(F, SUB)
    tb = min(512, _rup(B, SUB))
    Bp = _rup(B, tb)

    xp = jnp.pad(x, ((0, Bp - B), (0, Fp - F)))
    wp = jnp.pad(w2d, ((0, Fp - F), (0, Np - N)))
    bp = jnp.pad(bias, (0, Np - N)).reshape(1, Np)

    out = pl.pallas_call(
        _linear_kernel,
        out_shape=jax.ShapeDtypeStruct((Bp, Np), jnp.float32),
        grid=(Bp // tb,),
        in_specs=[pl.BlockSpec((tb, Fp), lambda i: (i, 0)),
                  pl.BlockSpec((Fp, Np), lambda i: (0, 0)),
                  pl.BlockSpec((1, Np), lambda i: (0, 0))],
        out_specs=pl.BlockSpec((tb, Np), lambda i: (i, 0)),
        compiler_params=pltpu.CompilerParams(
            dimension_semantics=("parallel",),
            vmem_limit_bytes=VMEM_LIMIT),
    )(xp, wp, bp)
    return out[:B, :N]


def init_params(key, num_frames, h, w, num_outputs):
    convw = conv2d_size_out(conv2d_size_out(conv2d_size_out(w)))
    convh = conv2d_size_out(conv2d_size_out(conv2d_size_out(h)))
    lin_in = convw * convh * 64

    keys = jax.random.split(key, 8)

    def wn(k, shape, scale=0.05):
        return (scale * jax.random.normal(k, shape)).astype(jnp.float32)

    # Conv biases are kept for spec fidelity but are not used in the forward
    # pass: train-mode BN mean subtraction cancels them exactly.
    params = {
        "conv1_w": wn(keys[0], (16, num_frames, 5, 5)),
        "conv1_b": wn(keys[1], (16,)),
        "bn1_g": jnp.ones((16,), jnp.float32),
        "bn1_b": jnp.zeros((16,), jnp.float32),
        "conv2_w": wn(keys[2], (32, 16, 5, 5)),
        "conv2_b": wn(keys[3], (32,)),
        "bn2_g": jnp.ones((32,), jnp.float32),
        "bn2_b": jnp.zeros((32,), jnp.float32),
        "conv3_w": wn(keys[4], (64, 32, 5, 5)),
        "conv3_b": wn(keys[5], (64,)),
        "bn3_g": jnp.ones((64,), jnp.float32),
        "bn3_b": jnp.zeros((64,), jnp.float32),
        "lin_w": wn(keys[6], (num_outputs, lin_in)),
        "lin_b": wn(keys[7], (num_outputs,)),
    }
    return params


def dqn_forward(params, x):
    """x: (B, num_frames, H, W) float32 NCHW -> (B, num_outputs)."""
    x = jnp.transpose(x, (0, 2, 3, 1))  # single NCHW -> NHWC conversion
    x = conv_block(x, params["conv1_w"], params["bn1_g"], params["bn1_b"])
    x = conv_block(x, params["conv2_w"], params["bn2_g"], params["bn2_b"])
    x = conv_block(x, params["conv3_w"], params["bn3_g"], params["bn3_b"])

    B, Hf, Wf, C = x.shape
    num_outputs = params["lin_w"].shape[0]
    # Compensate PyTorch's (C, H, W) flatten order by permuting lin_w once.
    lw = params["lin_w"].reshape(num_outputs, C, Hf, Wf)
    lw = jnp.transpose(lw, (2, 3, 1, 0)).reshape(Hf * Wf * C, num_outputs)
    xf = x.reshape(B, Hf * Wf * C)
    return linear(xf, lw, params["lin_b"])


# ---------------------------------------------------------------------------
if __name__ == "__main__":
    # Three stride-2 5x5 valid convs need H, W >= 29; use 36 -> 16 -> 6 -> 1,
    # so linear_input_size = 64.
    B, num_frames, H, W, num_outputs = 2, 4, 36, 36, 4

    key = jax.random.PRNGKey(0)
    pkey, xkey = jax.random.split(key)
    params = init_params(pkey, num_frames, H, W, num_outputs)
    x = jax.random.normal(xkey, (B, num_frames, H, W), dtype=jnp.float32)

    out = jax.jit(dqn_forward)(params, x)
    jax.block_until_ready(out)
    assert out.shape == (B, num_outputs), out.shape
    print("KERNEL_OK")
</pallas_src>

<mosaic_0001>
module attributes {stable_mosaic.version = 11 : i64} {
  func.func @_matmul_stats_kernel(%arg0: i32, %arg1: memref<512x128xf32, #tpu.memory_space<vmem>>, %arg2: memref<128x128xf32, #tpu.memory_space<vmem>>, %arg3: memref<512x128xf32, #tpu.memory_space<vmem>>, %arg4: memref<8x128xf32, #tpu.memory_space<vmem>>) attributes {dimension_semantics = [#tpu.dimension_semantics<arbitrary>], iteration_bounds = array<i64: 1>, scalar_prefetch = 0 : i64, scratch_operands = 0 : i64, tpu.core_type = #tpu.core_type<tc>, window_params = [{transform_indices = @transform_0, window_bounds = array<i64: 512, 128>}, {pipeline_mode = #tpu.pipeline_mode<synchronous>, transform_indices = @transform_1, window_bounds = array<i64: 128, 128>}, {transform_indices = @transform_2, window_bounds = array<i64: 512, 128>}, {pipeline_mode = #tpu.pipeline_mode<synchronous>, transform_indices = @transform_3, window_bounds = array<i64: 8, 128>}]} {
    %c0 = arith.constant 0 : index
    %c0_0 = arith.constant 0 : index
    %0 = vector.load %arg1[%c0, %c0_0] : memref<512x128xf32, #tpu.memory_space<vmem>>, vector<512x128xf32>
    %c0_1 = arith.constant 0 : index
    %c0_2 = arith.constant 0 : index
    %1 = vector.load %arg2[%c0_1, %c0_2] : memref<128x128xf32, #tpu.memory_space<vmem>>, vector<128x128xf32>
    %cst = arith.constant dense<0.000000e+00> : vector<512x128xf32>
    %2 = tpu.matmul %0, %1, %cst {dimension_numbers = #tpu.dot_dimension_numbers<[1], [0], [0], [1], [0, 0, 1, 1], [], []>} : vector<512x128xf32>, vector<128x128xf32>, vector<512x128xf32> -> vector<512x128xf32>
    %c0_3 = arith.constant 0 : index
    %c0_4 = arith.constant 0 : index
    %3 = vector.load %arg3[%c0_3, %c0_4] : memref<512x128xf32, #tpu.memory_space<vmem>>, vector<512x128xf32>
    tpu.vector_store %arg3[%c0_3, %c0_4], %2 {strides = array<i32>} : memref<512x128xf32, #tpu.memory_space<vmem>>, vector<512x128xf32>,
    %c0_i32 = arith.constant 0 : i32
    %4 = arith.cmpi eq, %arg0, %c0_i32 : i32
    %5 = arith.extui %4 : i1 to i32
    %c0_i32_5 = arith.constant 0 : i32
    %6 = arith.cmpi ne, %5, %c0_i32_5 : i32
    scf.if %6 {
      %cst_15 = arith.constant 0.000000e+00 : f32
      %18 = vector.broadcast %cst_15 : f32 to vector<8x128xf32>
      %c0_16 = arith.constant 0 : index
      %c0_17 = arith.constant 0 : index
      %19 = vector.load %arg4[%c0_16, %c0_17] : memref<8x128xf32, #tpu.memory_space<vmem>>, vector<8x128xf32>
      tpu.vector_store %arg4[%c0_16, %c0_17], %18 {strides = array<i32>} : memref<8x128xf32, #tpu.memory_space<vmem>>, vector<8x128xf32>,
    } else {
    }
    %c0_6 = arith.constant 0 : index
    %c0_7 = arith.constant 0 : index
    %7 = vector.load %arg4[%c0_6, %c0_7] : memref<8x128xf32, #tpu.memory_space<vmem>>, vector<1x128xf32>
    %cst_8 = arith.constant dense<0.000000e+00> : vector<128xf32>
    %8 = vector.multi_reduction <add>, %2, %cst_8 [0] : vector<512x128xf32> to vector<128xf32>
    %9 = vector.shape_cast %8 : vector<128xf32> to vector<1x128xf32>
    %10 = arith.addf %7, %9 : vector<1x128xf32>
    %c0_9 = arith.constant 0 : index
    %c0_10 = arith.constant 0 : index
    %11 = vector.load %arg4[%c0_9, %c0_10] : memref<8x128xf32, #tpu.memory_space<vmem>>, vector<1x128xf32>
    tpu.vector_store %arg4[%c0_9, %c0_10], %10 {strides = array<i32>} : memref<8x128xf32, #tpu.memory_space<vmem>>, vector<1x128xf32>,
    %c1 = arith.constant 1 : index
    %c0_11 = arith.constant 0 : index
    %12 = vector.load %arg4[%c1, %c0_11] : memref<8x128xf32, #tpu.memory_space<vmem>>, vector<1x128xf32>
    %13 = arith.mulf %2, %2 : vector<512x128xf32>
    %cst_12 = arith.constant dense<0.000000e+00> : vector<128xf32>
    %14 = vector.multi_reduction <add>, %13, %cst_12 [0] : vector<512x128xf32> to vector<128xf32>
    %15 = vector.shape_cast %14 : vector<128xf32> to vector<1x128xf32>
    %16 = arith.addf %12, %15 : vector<1x128xf32>
    %c1_13 = arith.constant 1 : index
    %c0_14 = arith.constant 0 : index
    %17 = vector.load %arg4[%c1_13, %c0_14] : memref<8x128xf32, #tpu.memory_space<vmem>>, vector<1x128xf32>
    tpu.vector_store %arg4[%c1_13, %c0_14], %16 {strides = array<i32>} : memref<8x128xf32, #tpu.memory_space<vmem>>, vector<1x128xf32>,
    return
  }
  func.func @transform_0(%arg0: i32) -> (i32, i32) {
    %c0_i32 = arith.constant 0 : i32
    %c0_i32_0 = arith.constant 0 : i32
    return %arg0, %c0_i32 : i32, i32
  }
  func.func @transform_1(%arg0: i32) -> (i32, i32) {
    %c0_i32 = arith.constant 0 : i32
    %c0_i32_0 = arith.constant 0 : i32
    %c0_i32_1 = arith.constant 0 : i32
    return %c0_i32, %c0_i32_0 : i32, i32
  }
  func.func @transform_2(%arg0: i32) -> (i32, i32) {
    %c0_i32 = arith.constant 0 : i32
    %c0_i32_0 = arith.constant 0 : i32
    return %arg0, %c0_i32 : i32, i32
  }
  func.func @transform_3(%arg0: i32) -> (i32, i32) {
    %c0_i32 = arith.constant 0 : i32
    %c0_i32_0 = arith.constant 0 : i32
    %c0_i32_1 = arith.constant 0 : i32
    return %c0_i32, %c0_i32_0 : i32, i32
  }
}

module attributes {stable_mosaic.version = 11 : i64} {
  func.func @_bn_relu_kernel(%arg0: i32, %arg1: memref<512x128xf32, #tpu.memory_space<vmem>>, %arg2: memref<1x128xf32, #tpu.memory_space<vmem>>, %arg3: memref<1x128xf32, #tpu.memory_space<vmem>>, %arg4: memref<512x128xf32, #tpu.memory_space<vmem>>) attributes {dimension_semantics = [#tpu.dimension_semantics<parallel>], iteration_bounds = array<i64: 1>, scalar_prefetch = 0 : i64, scratch_operands = 0 : i64, tpu.core_type = #tpu.core_type<tc>, window_params = [{transform_indices = @transform_0, window_bounds = array<i64: 512, 128>}, {pipeline_mode = #tpu.pipeline_mode<synchronous>, transform_indices = @transform_1, window_bounds = array<i64: 1, 128>}, {pipeline_mode = #tpu.pipeline_mode<synchronous>, transform_indices = @transform_2, window_bounds = array<i64: 1, 128>}, {transform_indices = @transform_3, window_bounds = array<i64: 512, 128>}]} {
    %c0 = arith.constant 0 : index
    %c0_0 = arith.constant 0 : index
    %0 = vector.load %arg1[%c0, %c0_0] : memref<512x128xf32, #tpu.memory_space<vmem>>, vector<512x128xf32>
    %c0_1 = arith.constant 0 : index
    %c0_2 = arith.constant 0 : index
    %1 = vector.load %arg2[%c0_1, %c0_2] : memref<1x128xf32, #tpu.memory_space<vmem>>, vector<1x128xf32>
    %2 = vector.broadcast %1 : vector<1x128xf32> to vector<512x128xf32>
    %3 = arith.mulf %0, %2 : vector<512x128xf32>
    %c0_3 = arith.constant 0 : index
    %c0_4 = arith.constant 0 : index
    %4 = vector.load %arg3[%c0_3, %c0_4] : memref<1x128xf32, #tpu.memory_space<vmem>>, vector<1x128xf32>
    %5 = vector.broadcast %4 : vector<1x128xf32> to vector<512x128xf32>
    %6 = arith.addf %3, %5 : vector<512x128xf32>
    %cst = arith.constant 0.000000e+00 : f32
    %7 = vector.broadcast %cst : f32 to vector<512x128xf32>
    %8 = arith.maximumf %6, %7 : vector<512x128xf32>
    %c0_5 = arith.constant 0 : index
    %c0_6 = arith.constant 0 : index
    %9 = vector.load %arg4[%c0_5, %c0_6] : memref<512x128xf32, #tpu.memory_space<vmem>>, vector<512x128xf32>
    tpu.vector_store %arg4[%c0_5, %c0_6], %8 {strides = array<i32>} : memref<512x128xf32, #tpu.memory_space<vmem>>, vector<512x128xf32>,
    return
  }
  func.func @transform_0(%arg0: i32) -> (i32, i32) {
    %c0_i32 = arith.constant 0 : i32
    %c0_i32_0 = arith.constant 0 : i32
    return %arg0, %c0_i32 : i32, i32
  }
  func.func @transform_1(%arg0: i32) -> (i32, i32) {
    %c0_i32 = arith.constant 0 : i32
    %c0_i32_0 = arith.constant 0 : i32
    %c0_i32_1 = arith.constant 0 : i32
    return %c0_i32, %c0_i32_0 : i32, i32
  }
  func.func @transform_2(%arg0: i32) -> (i32, i32) {
    %c0_i32 = arith.constant 0 : i32
    %c0_i32_0 = arith.constant 0 : i32
    %c0_i32_1 = arith.constant 0 : i32
    return %c0_i32, %c0_i32_0 : i32, i32
  }
  func.func @transform_3(%arg0: i32) -> (i32, i32) {
    %c0_i32 = arith.constant 0 : i32
    %c0_i32_0 = arith.constant 0 : i32
    return %arg0, %c0_i32 : i32, i32
  }
}

module attributes {stable_mosaic.version = 11 : i64} {
  func.func @_matmul_stats_kernel(%arg0: i32, %arg1: memref<72x400xf32, #tpu.memory_space<vmem>>, %arg2: memref<400x128xf32, #tpu.memory_space<vmem>>, %arg3: memref<72x128xf32, #tpu.memory_space<vmem>>, %arg4: memref<8x128xf32, #tpu.memory_space<vmem>>) attributes {dimension_semantics = [#tpu.dimension_semantics<arbitrary>], iteration_bounds = array<i64: 1>, scalar_prefetch = 0 : i64, scratch_operands = 0 : i64, tpu.core_type = #tpu.core_type<tc>, window_params = [{transform_indices = @transform_0, window_bounds = array<i64: 72, 400>}, {pipeline_mode = #tpu.pipeline_mode<synchronous>, transform_indices = @transform_1, window_bounds = array<i64: 400, 128>}, {transform_indices = @transform_2, window_bounds = array<i64: 72, 128>}, {pipeline_mode = #tpu.pipeline_mode<synchronous>, transform_indices = @transform_3, window_bounds = array<i64: 8, 128>}]} {
    %c0 = arith.constant 0 : index
    %c0_0 = arith.constant 0 : index
    %0 = vector.load %arg1[%c0, %c0_0] : memref<72x400xf32, #tpu.memory_space<vmem>>, vector<72x400xf32>
    %c0_1 = arith.constant 0 : index
    %c0_2 = arith.constant 0 : index
    %1 = vector.load %arg2[%c0_1, %c0_2] : memref<400x128xf32, #tpu.memory_space<vmem>>, vector<400x128xf32>
    %cst = arith.constant dense<0.000000e+00> : vector<72x128xf32>
    %2 = tpu.matmul %0, %1, %cst {dimension_numbers = #tpu.dot_dimension_numbers<[1], [0], [0], [1], [0, 0, 1, 1], [], []>} : vector<72x400xf32>, vector<400x128xf32>, vector<72x128xf32> -> vector<72x128xf32>
    %c0_3 = arith.constant 0 : index
    %c0_4 = arith.constant 0 : index
    %3 = vector.load %arg3[%c0_3, %c0_4] : memref<72x128xf32, #tpu.memory_space<vmem>>, vector<72x128xf32>
    tpu.vector_store %arg3[%c0_3, %c0_4], %2 {strides = array<i32>} : memref<72x128xf32, #tpu.memory_space<vmem>>, vector<72x128xf32>,
    %c0_i32 = arith.constant 0 : i32
    %4 = arith.cmpi eq, %arg0, %c0_i32 : i32
    %5 = arith.extui %4 : i1 to i32
    %c0_i32_5 = arith.constant 0 : i32
    %6 = arith.cmpi ne, %5, %c0_i32_5 : i32
    scf.if %6 {
      %cst_15 = arith.constant 0.000000e+00 : f32
      %18 = vector.broadcast %cst_15 : f32 to vector<8x128xf32>
      %c0_16 = arith.constant 0 : index
      %c0_17 = arith.constant 0 : index
      %19 = vector.load %arg4[%c0_16, %c0_17] : memref<8x128xf32, #tpu.memory_space<vmem>>, vector<8x128xf32>
      tpu.vector_store %arg4[%c0_16, %c0_17], %18 {strides = array<i32>} : memref<8x128xf32, #tpu.memory_space<vmem>>, vector<8x128xf32>,
    } else {
    }
    %c0_6 = arith.constant 0 : index
    %c0_7 = arith.constant 0 : index
    %7 = vector.load %arg4[%c0_6, %c0_7] : memref<8x128xf32, #tpu.memory_space<vmem>>, vector<1x128xf32>
    %cst_8 = arith.constant dense<0.000000e+00> : vector<128xf32>
    %8 = vector.multi_reduction <add>, %2, %cst_8 [0] : vector<72x128xf32> to vector<128xf32>
    %9 = vector.shape_cast %8 : vector<128xf32> to vector<1x128xf32>
    %10 = arith.addf %7, %9 : vector<1x128xf32>
    %c0_9 = arith.constant 0 : index
    %c0_10 = arith.constant 0 : index
    %11 = vector.load %arg4[%c0_9, %c0_10] : memref<8x128xf32, #tpu.memory_space<vmem>>, vector<1x128xf32>
    tpu.vector_store %arg4[%c0_9, %c0_10], %10 {strides = array<i32>} : memref<8x128xf32, #tpu.memory_space<vmem>>, vector<1x128xf32>,
    %c1 = arith.constant 1 : index
    %c0_11 = arith.constant 0 : index
    %12 = vector.load %arg4[%c1, %c0_11] : memref<8x128xf32, #tpu.memory_space<vmem>>, vector<1x128xf32>
    %13 = arith.mulf %2, %2 : vector<72x128xf32>
    %cst_12 = arith.constant dense<0.000000e+00> : vector<128xf32>
    %14 = vector.multi_reduction <add>, %13, %cst_12 [0] : vector<72x128xf32> to vector<128xf32>
    %15 = vector.shape_cast %14 : vector<128xf32> to vector<1x128xf32>
    %16 = arith.addf %12, %15 : vector<1x128xf32>
    %c1_13 = arith.constant 1 : index
    %c0_14 = arith.constant 0 : index
    %17 = vector.load %arg4[%c1_13, %c0_14] : memref<8x128xf32, #tpu.memory_space<vmem>>, vector<1x128xf32>
    tpu.vector_store %arg4[%c1_13, %c0_14], %16 {strides = array<i32>} : memref<8x128xf32, #tpu.memory_space<vmem>>, vector<1x128xf32>,
    return
  }
  func.func @transform_0(%arg0: i32) -> (i32, i32) {
    %c0_i32 = arith.constant 0 : i32
    %c0_i32_0 = arith.constant 0 : i32
    return %arg0, %c0_i32 : i32, i32
  }
  func.func @transform_1(%arg0: i32) -> (i32, i32) {
    %c0_i32 = arith.constant 0 : i32
    %c0_i32_0 = arith.constant 0 : i32
    %c0_i32_1 = arith.constant 0 : i32
    return %c0_i32, %c0_i32_0 : i32, i32
  }
  func.func @transform_2(%arg0: i32) -> (i32, i32) {
    %c0_i32 = arith.constant 0 : i32
    %c0_i32_0 = arith.constant 0 : i32
    return %arg0, %c0_i32 : i32, i32
  }
  func.func @transform_3(%arg0: i32) -> (i32, i32) {
    %c0_i32 = arith.constant 0 : i32
    %c0_i32_0 = arith.constant 0 : i32
    %c0_i32_1 = arith.constant 0 : i32
    return %c0_i32, %c0_i32_0 : i32, i32
  }
}

module attributes {stable_mosaic.version = 11 : i64} {
  func.func @_bn_relu_kernel(%arg0: i32, %arg1: memref<72x128xf32, #tpu.memory_space<vmem>>, %arg2: memref<1x128xf32, #tpu.memory_space<vmem>>, %arg3: memref<1x128xf32, #tpu.memory_space<vmem>>, %arg4: memref<72x128xf32, #tpu.memory_space<vmem>>) attributes {dimension_semantics = [#tpu.dimension_semantics<parallel>], iteration_bounds = array<i64: 1>, scalar_prefetch = 0 : i64, scratch_operands = 0 : i64, tpu.core_type = #tpu.core_type<tc>, window_params = [{transform_indices = @transform_0, window_bounds = array<i64: 72, 128>}, {pipeline_mode = #tpu.pipeline_mode<synchronous>, transform_indices = @transform_1, window_bounds = array<i64: 1, 128>}, {pipeline_mode = #tpu.pipeline_mode<synchronous>, transform_indices = @transform_2, window_bounds = array<i64: 1, 128>}, {transform_indices = @transform_3, window_bounds = array<i64: 72, 128>}]} {
    %c0 = arith.constant 0 : index
    %c0_0 = arith.constant 0 : index
    %0 = vector.load %arg1[%c0, %c0_0] : memref<72x128xf32, #tpu.memory_space<vmem>>, vector<72x128xf32>
    %c0_1 = arith.constant 0 : index
    %c0_2 = arith.constant 0 : index
    %1 = vector.load %arg2[%c0_1, %c0_2] : memref<1x128xf32, #tpu.memory_space<vmem>>, vector<1x128xf32>
    %2 = vector.broadcast %1 : vector<1x128xf32> to vector<72x128xf32>
    %3 = arith.mulf %0, %2 : vector<72x128xf32>
    %c0_3 = arith.constant 0 : index
    %c0_4 = arith.constant 0 : index
    %4 = vector.load %arg3[%c0_3, %c0_4] : memref<1x128xf32, #tpu.memory_space<vmem>>, vector<1x128xf32>
    %5 = vector.broadcast %4 : vector<1x128xf32> to vector<72x128xf32>
    %6 = arith.addf %3, %5 : vector<72x128xf32>
    %cst = arith.constant 0.000000e+00 : f32
    %7 = vector.broadcast %cst : f32 to vector<72x128xf32>
    %8 = arith.maximumf %6, %7 : vector<72x128xf32>
    %c0_5 = arith.constant 0 : index
    %c0_6 = arith.constant 0 : index
    %9 = vector.load %arg4[%c0_5, %c0_6] : memref<72x128xf32, #tpu.memory_space<vmem>>, vector<72x128xf32>
    tpu.vector_store %arg4[%c0_5, %c0_6], %8 {strides = array<i32>} : memref<72x128xf32, #tpu.memory_space<vmem>>, vector<72x128xf32>,
    return
  }
  func.func @transform_0(%arg0: i32) -> (i32, i32) {
    %c0_i32 = arith.constant 0 : i32
    %c0_i32_0 = arith.constant 0 : i32
    return %arg0, %c0_i32 : i32, i32
  }
  func.func @transform_1(%arg0: i32) -> (i32, i32) {
    %c0_i32 = arith.constant 0 : i32
    %c0_i32_0 = arith.constant 0 : i32
    %c0_i32_1 = arith.constant 0 : i32
    return %c0_i32, %c0_i32_0 : i32, i32
  }
  func.func @transform_2(%arg0: i32) -> (i32, i32) {
    %c0_i32 = arith.constant 0 : i32
    %c0_i32_0 = arith.constant 0 : i32
    %c0_i32_1 = arith.constant 0 : i32
    return %c0_i32, %c0_i32_0 : i32, i32
  }
  func.func @transform_3(%arg0: i32) -> (i32, i32) {
    %c0_i32 = arith.constant 0 : i32
    %c0_i32_0 = arith.constant 0 : i32
    return %arg0, %c0_i32 : i32, i32
  }
}

module attributes {stable_mosaic.version = 11 : i64} {
  func.func @_matmul_stats_kernel(%arg0: i32, %arg1: memref<8x800xf32, #tpu.memory_space<vmem>>, %arg2: memref<800x128xf32, #tpu.memory_space<vmem>>, %arg3: memref<8x128xf32, #tpu.memory_space<vmem>>, %arg4: memref<8x128xf32, #tpu.memory_space<vmem>>) attributes {dimension_semantics = [#tpu.dimension_semantics<arbitrary>], iteration_bounds = array<i64: 1>, scalar_prefetch = 0 : i64, scratch_operands = 0 : i64, tpu.core_type = #tpu.core_type<tc>, window_params = [{transform_indices = @transform_0, window_bounds = array<i64: 8, 800>}, {pipeline_mode = #tpu.pipeline_mode<synchronous>, transform_indices = @transform_1, window_bounds = array<i64: 800, 128>}, {transform_indices = @transform_2, window_bounds = array<i64: 8, 128>}, {pipeline_mode = #tpu.pipeline_mode<synchronous>, transform_indices = @transform_3, window_bounds = array<i64: 8, 128>}]} {
    %c0 = arith.constant 0 : index
    %c0_0 = arith.constant 0 : index
    %0 = vector.load %arg1[%c0, %c0_0] : memref<8x800xf32, #tpu.memory_space<vmem>>, vector<8x800xf32>
    %c0_1 = arith.constant 0 : index
    %c0_2 = arith.constant 0 : index
    %1 = vector.load %arg2[%c0_1, %c0_2] : memref<800x128xf32, #tpu.memory_space<vmem>>, vector<800x128xf32>
    %cst = arith.constant dense<0.000000e+00> : vector<8x128xf32>
    %2 = tpu.matmul %0, %1, %cst {dimension_numbers = #tpu.dot_dimension_numbers<[1], [0], [0], [1], [0, 0, 1, 1], [], []>} : vector<8x800xf32>, vector<800x128xf32>, vector<8x128xf32> -> vector<8x128xf32>
    %c0_3 = arith.constant 0 : index
    %c0_4 = arith.constant 0 : index
    %3 = vector.load %arg3[%c0_3, %c0_4] : memref<8x128xf32, #tpu.memory_space<vmem>>, vector<8x128xf32>
    tpu.vector_store %arg3[%c0_3, %c0_4], %2 {strides = array<i32>} : memref<8x128xf32, #tpu.memory_space<vmem>>, vector<8x128xf32>,
    %c0_i32 = arith.constant 0 : i32
    %4 = arith.cmpi eq, %arg0, %c0_i32 : i32
    %5 = arith.extui %4 : i1 to i32
    %c0_i32_5 = arith.constant 0 : i32
    %6 = arith.cmpi ne, %5, %c0_i32_5 : i32
    scf.if %6 {
      %cst_15 = arith.constant 0.000000e+00 : f32
      %18 = vector.broadcast %cst_15 : f32 to vector<8x128xf32>
      %c0_16 = arith.constant 0 : index
      %c0_17 = arith.constant 0 : index
      %19 = vector.load %arg4[%c0_16, %c0_17] : memref<8x128xf32, #tpu.memory_space<vmem>>, vector<8x128xf32>
      tpu.vector_store %arg4[%c0_16, %c0_17], %18 {strides = array<i32>} : memref<8x128xf32, #tpu.memory_space<vmem>>, vector<8x128xf32>,
    } else {
    }
    %c0_6 = arith.constant 0 : index
    %c0_7 = arith.constant 0 : index
    %7 = vector.load %arg4[%c0_6, %c0_7] : memref<8x128xf32, #tpu.memory_space<vmem>>, vector<1x128xf32>
    %cst_8 = arith.constant dense<0.000000e+00> : vector<128xf32>
    %8 = vector.multi_reduction <add>, %2, %cst_8 [0] : vector<8x128xf32> to vector<128xf32>
    %9 = vector.shape_cast %8 : vector<128xf32> to vector<1x128xf32>
    %10 = arith.addf %7, %9 : vector<1x128xf32>
    %c0_9 = arith.constant 0 : index
    %c0_10 = arith.constant 0 : index
    %11 = vector.load %arg4[%c0_9, %c0_10] : memref<8x128xf32, #tpu.memory_space<vmem>>, vector<1x128xf32>
    tpu.vector_store %arg4[%c0_9, %c0_10], %10 {strides = array<i32>} : memref<8x128xf32, #tpu.memory_space<vmem>>, vector<1x128xf32>,
    %c1 = arith.constant 1 : index
    %c0_11 = arith.constant 0 : index
    %12 = vector.load %arg4[%c1, %c0_11] : memref<8x128xf32, #tpu.memory_space<vmem>>, vector<1x128xf32>
    %13 = arith.mulf %2, %2 : vector<8x128xf32>
    %cst_12 = arith.constant dense<0.000000e+00> : vector<128xf32>
    %14 = vector.multi_reduction <add>, %13, %cst_12 [0] : vector<8x128xf32> to vector<128xf32>
    %15 = vector.shape_cast %14 : vector<128xf32> to vector<1x128xf32>
    %16 = arith.addf %12, %15 : vector<1x128xf32>
    %c1_13 = arith.constant 1 : index
    %c0_14 = arith.constant 0 : index
    %17 = vector.load %arg4[%c1_13, %c0_14] : memref<8x128xf32, #tpu.memory_space<vmem>>, vector<1x128xf32>
    tpu.vector_store %arg4[%c1_13, %c0_14], %16 {strides = array<i32>} : memref<8x128xf32, #tpu.memory_space<vmem>>, vector<1x128xf32>,
    return
  }
  func.func @transform_0(%arg0: i32) -> (i32, i32) {
    %c0_i32 = arith.constant 0 : i32
    %c0_i32_0 = arith.constant 0 : i32
    return %arg0, %c0_i32 : i32, i32
  }
  func.func @transform_1(%arg0: i32) -> (i32, i32) {
    %c0_i32 = arith.constant 0 : i32
    %c0_i32_0 = arith.constant 0 : i32
    %c0_i32_1 = arith.constant 0 : i32
    return %c0_i32, %c0_i32_0 : i32, i32
  }
  func.func @transform_2(%arg0: i32) -> (i32, i32) {
    %c0_i32 = arith.constant 0 : i32
    %c0_i32_0 = arith.constant 0 : i32
    return %arg0, %c0_i32 : i32, i32
  }
  func.func @transform_3(%arg0: i32) -> (i32, i32) {
    %c0_i32 = arith.constant 0 : i32
    %c0_i32_0 = arith.constant 0 : i32
    %c0_i32_1 = arith.constant 0 : i32
    return %c0_i32, %c0_i32_0 : i32, i32
  }
}

module attributes {stable_mosaic.version = 11 : i64} {
  func.func @_bn_relu_kernel(%arg0: i32, %arg1: memref<8x128xf32, #tpu.memory_space<vmem>>, %arg2: memref<1x128xf32, #tpu.memory_space<vmem>>, %arg3: memref<1x128xf32, #tpu.memory_space<vmem>>, %arg4: memref<8x128xf32, #tpu.memory_space<vmem>>) attributes {dimension_semantics = [#tpu.dimension_semantics<parallel>], iteration_bounds = array<i64: 1>, scalar_prefetch = 0 : i64, scratch_operands = 0 : i64, tpu.core_type = #tpu.core_type<tc>, window_params = [{transform_indices = @transform_0, window_bounds = array<i64: 8, 128>}, {pipeline_mode = #tpu.pipeline_mode<synchronous>, transform_indices = @transform_1, window_bounds = array<i64: 1, 128>}, {pipeline_mode = #tpu.pipeline_mode<synchronous>, transform_indices = @transform_2, window_bounds = array<i64: 1, 128>}, {transform_indices = @transform_3, window_bounds = array<i64: 8, 128>}]} {
    %c0 = arith.constant 0 : index
    %c0_0 = arith.constant 0 : index
    %0 = vector.load %arg1[%c0, %c0_0] : memref<8x128xf32, #tpu.memory_space<vmem>>, vector<8x128xf32>
    %c0_1 = arith.constant 0 : index
    %c0_2 = arith.constant 0 : index
    %1 = vector.load %arg2[%c0_1, %c0_2] : memref<1x128xf32, #tpu.memory_space<vmem>>, vector<1x128xf32>
    %2 = vector.broadcast %1 : vector<1x128xf32> to vector<8x128xf32>
    %3 = arith.mulf %0, %2 : vector<8x128xf32>
    %c0_3 = arith.constant 0 : index
    %c0_4 = arith.constant 0 : index
    %4 = vector.load %arg3[%c0_3, %c0_4] : memref<1x128xf32, #tpu.memory_space<vmem>>, vector<1x128xf32>
    %5 = vector.broadcast %4 : vector<1x128xf32> to vector<8x128xf32>
    %6 = arith.addf %3, %5 : vector<8x128xf32>
    %cst = arith.constant 0.000000e+00 : f32
    %7 = vector.broadcast %cst : f32 to vector<8x128xf32>
    %8 = arith.maximumf %6, %7 : vector<8x128xf32>
    %c0_5 = arith.constant 0 : index
    %c0_6 = arith.constant 0 : index
    %9 = vector.load %arg4[%c0_5, %c0_6] : memref<8x128xf32, #tpu.memory_space<vmem>>, vector<8x128xf32>
    tpu.vector_store %arg4[%c0_5, %c0_6], %8 {strides = array<i32>} : memref<8x128xf32, #tpu.memory_space<vmem>>, vector<8x128xf32>,
    return
  }
  func.func @transform_0(%arg0: i32) -> (i32, i32) {
    %c0_i32 = arith.constant 0 : i32
    %c0_i32_0 = arith.constant 0 : i32
    return %arg0, %c0_i32 : i32, i32
  }
  func.func @transform_1(%arg0: i32) -> (i32, i32) {
    %c0_i32 = arith.constant 0 : i32
    %c0_i32_0 = arith.constant 0 : i32
    %c0_i32_1 = arith.constant 0 : i32
    return %c0_i32, %c0_i32_0 : i32, i32
  }
  func.func @transform_2(%arg0: i32) -> (i32, i32) {
    %c0_i32 = arith.constant 0 : i32
    %c0_i32_0 = arith.constant 0 : i32
    %c0_i32_1 = arith.constant 0 : i32
    return %c0_i32, %c0_i32_0 : i32, i32
  }
  func.func @transform_3(%arg0: i32) -> (i32, i32) {
    %c0_i32 = arith.constant 0 : i32
    %c0_i32_0 = arith.constant 0 : i32
    return %arg0, %c0_i32 : i32, i32
  }
}

module attributes {stable_mosaic.version = 11 : i64} {
  func.func @_linear_kernel(%arg0: i32, %arg1: memref<8x64xf32, #tpu.memory_space<vmem>>, %arg2: memref<64x128xf32, #tpu.memory_space<vmem>>, %arg3: memref<1x128xf32, #tpu.memory_space<vmem>>, %arg4: memref<8x128xf32, #tpu.memory_space<vmem>>) attributes {dimension_semantics = [#tpu.dimension_semantics<parallel>], iteration_bounds = array<i64: 1>, scalar_prefetch = 0 : i64, scratch_operands = 0 : i64, tpu.core_type = #tpu.core_type<tc>, window_params = [{transform_indices = @transform_0, window_bounds = array<i64: 8, 64>}, {pipeline_mode = #tpu.pipeline_mode<synchronous>, transform_indices = @transform_1, window_bounds = array<i64: 64, 128>}, {pipeline_mode = #tpu.pipeline_mode<synchronous>, transform_indices = @transform_2, window_bounds = array<i64: 1, 128>}, {transform_indices = @transform_3, window_bounds = array<i64: 8, 128>}]} {
    %c0 = arith.constant 0 : index
    %c0_0 = arith.constant 0 : index
    %0 = vector.load %arg1[%c0, %c0_0] : memref<8x64xf32, #tpu.memory_space<vmem>>, vector<8x64xf32>
    %c0_1 = arith.constant 0 : index
    %c0_2 = arith.constant 0 : index
    %1 = vector.load %arg2[%c0_1, %c0_2] : memref<64x128xf32, #tpu.memory_space<vmem>>, vector<64x128xf32>
    %cst = arith.constant dense<0.000000e+00> : vector<8x128xf32>
    %2 = tpu.matmul %0, %1, %cst {dimension_numbers = #tpu.dot_dimension_numbers<[1], [0], [0], [1], [0, 0, 1, 1], [], []>} : vector<8x64xf32>, vector<64x128xf32>, vector<8x128xf32> -> vector<8x128xf32>
    %c0_3 = arith.constant 0 : index
    %c0_4 = arith.constant 0 : index
    %3 = vector.load %arg3[%c0_3, %c0_4] : memref<1x128xf32, #tpu.memory_space<vmem>>, vector<1x128xf32>
    %4 = vector.broadcast %3 : vector<1x128xf32> to vector<8x128xf32>
    %5 = arith.addf %2, %4 : vector<8x128xf32>
    %c0_5 = arith.constant 0 : index
    %c0_6 = arith.constant 0 : index
    %6 = vector.load %arg4[%c0_5, %c0_6] : memref<8x128xf32, #tpu.memory_space<vmem>>, vector<8x128xf32>
    tpu.vector_store %arg4[%c0_5, %c0_6], %5 {strides = array<i32>} : memref<8x128xf32, #tpu.memory_space<vmem>>, vector<8x128xf32>,
    return
  }
  func.func @transform_0(%arg0: i32) -> (i32, i32) {
    %c0_i32 = arith.constant 0 : i32
    %c0_i32_0 = arith.constant 0 : i32
    return %arg0, %c0_i32 : i32, i32
  }
  func.func @transform_1(%arg0: i32) -> (i32, i32) {
    %c0_i32 = arith.constant 0 : i32
    %c0_i32_0 = arith.constant 0 : i32
    %c0_i32_1 = arith.constant 0 : i32
    return %c0_i32, %c0_i32_0 : i32, i32
  }
  func.func @transform_2(%arg0: i32) -> (i32, i32) {
    %c0_i32 = arith.constant 0 : i32
    %c0_i32_0 = arith.constant 0 : i32
    %c0_i32_1 = arith.constant 0 : i32
    return %c0_i32, %c0_i32_0 : i32, i32
  }
  func.func @transform_3(%arg0: i32) -> (i32, i32) {
    %c0_i32 = arith.constant 0 : i32
    %c0_i32_0 = arith.constant 0 : i32
    return %arg0, %c0_i32 : i32, i32
  }
}

</mosaic_0001>

<llo_original>
// kernel: dqn_forward.8
$region0: #{dqn_forward.8}
  #allocation0 [shape = 'u32[]', space=smem, size = 0x4, offset = 0x4, fixed_abs, tag = 'smem constant byte address 0x4 - core index']
  #allocation1 [shape = 'u32[72,128]{1,0:T(1,128)}', space=vmem, size = 0x9000, scoped, tag = 'internal scratch']
  %s0 = inlined_call_operand.vmem [shape: f32[512,128], index: 0, kind: input, shape index: {}]
  %s1 = inlined_call_operand.vmem [shape: f32[1,128], index: 1, kind: input, shape index: {}]
  %s2 = inlined_call_operand.vmem [shape: f32[1,128], index: 2, kind: input, shape index: {}]
  %s3 = inlined_call_operand.vmem [shape: f32[512,128], index: 3, kind: output, shape index: {}]
  %s4 = sld [smem:[#allocation0]]
  $region22: #{dqn_forward.8} parent=0
    _
  %s6 = ssub.s32 1, %s4
  %s7 = scalar_select 0, %s6, %s4
  // Predicated region
  $region2: #{dqn_forward.8} parent=0 // pred_check
    _
  $region3: #{dqn_forward.8} parent=0 // pred_check_branch
    %9 = sbr.rel (0) target = $region5
  $region4: #{dqn_forward.8} parent=0 // pred_region
    _
  $region5: #{dqn_forward.8} parent=0 // pred_fallthru
    _
  // Predicated region
  $region6: #{dqn_forward.8} parent=0 // pred_check
    _
  $region7: #{dqn_forward.8} parent=0 // pred_check_branch
    %11 = sbr.rel (0) target = $region9
  $region8: #{dqn_forward.8} parent=0 // pred_region
    _
  $region9: #{dqn_forward.8} parent=0 // pred_fallthru
    _
  // Predicated region
  $region10: #{dqn_forward.8} parent=0 // pred_check
    _
  $region11: #{dqn_forward.8} parent=0 // pred_check_branch
    %13 = sbr.rel (0) target = $region13
  $region12: #{dqn_forward.8} parent=0 // pred_region
    _
  $region13: #{dqn_forward.8} parent=0 // pred_fallthru
    _
  %v14 = vld [vmem:[%s0] sm:$0xff]
  %v15 = vld [vmem:[%s0 + $0x8] sm:$0xff]
  %v16 = vld [vmem:[%s0 + $0x10] sm:$0xff]
  %v17 = vld [vmem:[%s0 + $0x18] sm:$0xff]
  %v18 = vld [vmem:[%s0 + $0x20] sm:$0xff]
  %v19 = vld [vmem:[%s0 + $0x28] sm:$0xff]
  %v20 = vld [vmem:[%s0 + $0x30] sm:$0xff]
  %v21 = vld [vmem:[%s0 + $0x38] sm:$0xff]
  %v22 = vld [vmem:[%s0 + $0x40] sm:$0xff]
  %v23 = vld [vmem:[%s0 + $0x48] sm:$0xff]
  %v24 = vld [vmem:[%s0 + $0x50] sm:$0xff]
  %v25 = vld [vmem:[%s0 + $0x58] sm:$0xff]
  %v26 = vld [vmem:[%s0 + $0x60] sm:$0xff]
  %v27 = vld [vmem:[%s0 + $0x68] sm:$0xff]
  %v28 = vld [vmem:[%s0 + $0x70] sm:$0xff]
  %v29 = vld [vmem:[%s0 + $0x78] sm:$0xff]
  %v30 = vld [vmem:[%s0 + $0x80] sm:$0xff]
  %v31 = vld [vmem:[%s0 + $0x88] sm:$0xff]
  %v32 = vld [vmem:[%s0 + $0x90] sm:$0xff]
  %v33 = vld [vmem:[%s0 + $0x98] sm:$0xff]
  %v34 = vld [vmem:[%s0 + $0xa0] sm:$0xff]
  %v35 = vld [vmem:[%s0 + $0xa8] sm:$0xff]
  %v36 = vld [vmem:[%s0 + $0xb0] sm:$0xff]
  %v37 = vld [vmem:[%s0 + $0xb8] sm:$0xff]
  %v38 = vld [vmem:[%s0 + $0xc0] sm:$0xff]
  %v39 = vld [vmem:[%s0 + $0xc8] sm:$0xff]
  %v40 = vld [vmem:[%s0 + $0xd0] sm:$0xff]
  %v41 = vld [vmem:[%s0 + $0xd8] sm:$0xff]
  %v42 = vld [vmem:[%s0 + $0xe0] sm:$0xff]
  %v43 = vld [vmem:[%s0 + $0xe8] sm:$0xff]
  %v44 = vld [vmem:[%s0 + $0xf0] sm:$0xff]
  %v45 = vld [vmem:[%s0 + $0xf8] sm:$0xff]
  %v46 = vld [vmem:[%s0 + $0x100] sm:$0xff]
  %v47 = vld [vmem:[%s0 + $0x108] sm:$0xff]
  %v48 = vld [vmem:[%s0 + $0x110] sm:$0xff]
  %v49 = vld [vmem:[%s0 + $0x118] sm:$0xff]
  %v50 = vld [vmem:[%s0 + $0x120] sm:$0xff]
  %v51 = vld [vmem:[%s0 + $0x128] sm:$0xff]
  %v52 = vld [vmem:[%s0 + $0x130] sm:$0xff]
  %v53 = vld [vmem:[%s0 + $0x138] sm:$0xff]
  %v54 = vld [vmem:[%s0 + $0x140] sm:$0xff]
  %v55 = vld [vmem:[%s0 + $0x148] sm:$0xff]
  %v56 = vld [vmem:[%s0 + $0x150] sm:$0xff]
  %v57 = vld [vmem:[%s0 + $0x158] sm:$0xff]
  %v58 = vld [vmem:[%s0 + $0x160] sm:$0xff]
  %v59 = vld [vmem:[%s0 + $0x168] sm:$0xff]
  %v60 = vld [vmem:[%s0 + $0x170] sm:$0xff]
  %v61 = vld [vmem:[%s0 + $0x178] sm:$0xff]
  %v62 = vld [vmem:[%s0 + $0x180] sm:$0xff]
  %v63 = vld [vmem:[%s0 + $0x188] sm:$0xff]
  %v64 = vld [vmem:[%s0 + $0x190] sm:$0xff]
  %v65 = vld [vmem:[%s0 + $0x198] sm:$0xff]
  %v66 = vld [vmem:[%s0 + $0x1a0] sm:$0xff]
  %v67 = vld [vmem:[%s0 + $0x1a8] sm:$0xff]
  %v68 = vld [vmem:[%s0 + $0x1b0] sm:$0xff]
  %v69 = vld [vmem:[%s0 + $0x1b8] sm:$0xff]
  %v70 = vld [vmem:[%s0 + $0x1c0] sm:$0xff]
  %v71 = vld [vmem:[%s0 + $0x1c8] sm:$0xff]
  %v72 = vld [vmem:[%s0 + $0x1d0] sm:$0xff]
  %v73 = vld [vmem:[%s0 + $0x1d8] sm:$0xff]
  %v74 = vld [vmem:[%s0 + $0x1e0] sm:$0xff]
  %v75 = vld [vmem:[%s0 + $0x1e8] sm:$0xff]
  %v76 = vld [vmem:[%s0 + $0x1f0] sm:$0xff]
  %v77 = vld [vmem:[%s0 + $0x1f8] sm:$0xff]
  %v78 = vld [vmem:[%s1] sm:$0x1]
  %v80 = vperm.slane %v78, 0
  %v82 = vmul.f32 %v14, %v80
  %v83 = vmul.f32 %v15, %v80
  %v84 = vmul.f32 %v16, %v80
  %v85 = vmul.f32 %v17, %v80
  %v86 = vmul.f32 %v18, %v80
  %v87 = vmul.f32 %v19, %v80
  %v88 = vmul.f32 %v20, %v80
  %v89 = vmul.f32 %v21, %v80
  %v90 = vmul.f32 %v22, %v80
  %v91 = vmul.f32 %v23, %v80
  %v92 = vmul.f32 %v24, %v80
  %v93 = vmul.f32 %v25, %v80
  %v94 = vmul.f32 %v26, %v80
  %v95 = vmul.f32 %v27, %v80
  %v96 = vmul.f32 %v28, %v80
  %v97 = vmul.f32 %v29, %v80
  %v98 = vmul.f32 %v30, %v80
  %v99 = vmul.f32 %v31, %v80
  %v100 = vmul.f32 %v32, %v80
  %v101 = vmul.f32 %v33, %v80
  %v102 = vmul.f32 %v34, %v80
  %v103 = vmul.f32 %v35, %v80
  %v104 = vmul.f32 %v36, %v80
  %v105 = vmul.f32 %v37, %v80
  %v106 = vmul.f32 %v38, %v80
  %v107 = vmul.f32 %v39, %v80
  %v108 = vmul.f32 %v40, %v80
  %v109 = vmul.f32 %v41, %v80
  %v110 = vmul.f32 %v42, %v80
  %v111 = vmul.f32 %v43, %v80
  %v112 = vmul.f32 %v44, %v80
  %v113 = vmul.f32 %v45, %v80
  %v114 = vmul.f32 %v46, %v80
  %v115 = vmul.f32 %v47, %v80
  %v116 = vmul.f32 %v48, %v80
  %v117 = vmul.f32 %v49, %v80
  %v118 = vmul.f32 %v50, %v80
  %v119 = vmul.f32 %v51, %v80
  %v120 = vmul.f32 %v52, %v80
  %v121 = vmul.f32 %v53, %v80
  %v122 = vmul.f32 %v54, %v80
  %v123 = vmul.f32 %v55, %v80
  %v124 = vmul.f32 %v56, %v80
  %v125 = vmul.f32 %v57, %v80
  %v126 = vmul.f32 %v58, %v80
  %v127 = vmul.f32 %v59, %v80
  %v128 = vmul.f32 %v60, %v80
  %v129 = vmul.f32 %v61, %v80
  %v130 = vmul.f32 %v62, %v80
  %v131 = vmul.f32 %v63, %v80
  %v132 = vmul.f32 %v64, %v80
  %v133 = vmul.f32 %v65, %v80
  %v134 = vmul.f32 %v66, %v80
  %v135 = vmul.f32 %v67, %v80
  %v136 = vmul.f32 %v68, %v80
  %v137 = vmul.f32 %v69, %v80
  %v138 = vmul.f32 %v70, %v80
  %v139 = vmul.f32 %v71, %v80
  %v140 = vmul.f32 %v72, %v80
  %v141 = vmul.f32 %v73, %v80
  %v142 = vmul.f32 %v74, %v80
  %v143 = vmul.f32 %v75, %v80
  %v144 = vmul.f32 %v76, %v80
  %v145 = vmul.f32 %v77, %v80
  %v146 = vld [vmem:[%s2] sm:$0x1]
  %v148 = vperm.slane %v146, 0
  %v150 = vadd.f32 %v82, %v148
  %v151 = vadd.f32 %v83, %v148
  %v152 = vadd.f32 %v84, %v148
  %v153 = vadd.f32 %v85, %v148
  %v154 = vadd.f32 %v86, %v148
  %v155 = vadd.f32 %v87, %v148
  %v156 = vadd.f32 %v88, %v148
  %v157 = vadd.f32 %v89, %v148
  %v158 = vadd.f32 %v90, %v148
  %v159 = vadd.f32 %v91, %v148
  %v160 = vadd.f32 %v92, %v148
  %v161 = vadd.f32 %v93, %v148
  %v162 = vadd.f32 %v94, %v148
  %v163 = vadd.f32 %v95, %v148
  %v164 = vadd.f32 %v96, %v148
  %v165 = vadd.f32 %v97, %v148
  %v166 = vadd.f32 %v98, %v148
  %v167 = vadd.f32 %v99, %v148
  %v168 = vadd.f32 %v100, %v148
  %v169 = vadd.f32 %v101, %v148
  %v170 = vadd.f32 %v102, %v148
  %v171 = vadd.f32 %v103, %v148
  %v172 = vadd.f32 %v104, %v148
  %v173 = vadd.f32 %v105, %v148
  %v174 = vadd.f32 %v106, %v148
  %v175 = vadd.f32 %v107, %v148
  %v176 = vadd.f32 %v108, %v148
  %v177 = vadd.f32 %v109, %v148
  %v178 = vadd.f32 %v110, %v148
  %v179 = vadd.f32 %v111, %v148
  %v180 = vadd.f32 %v112, %v148
  %v181 = vadd.f32 %v113, %v148
  %v182 = vadd.f32 %v114, %v148
  %v183 = vadd.f32 %v115, %v148
  %v184 = vadd.f32 %v116, %v148
  %v185 = vadd.f32 %v117, %v148
  %v186 = vadd.f32 %v118, %v148
  %v187 = vadd.f32 %v119, %v148
  %v188 = vadd.f32 %v120, %v148
  %v189 = vadd.f32 %v121, %v148
  %v190 = vadd.f32 %v122, %v148
  %v191 = vadd.f32 %v123, %v148
  %v192 = vadd.f32 %v124, %v148
  %v193 = vadd.f32 %v125, %v148
  %v194 = vadd.f32 %v126, %v148
  %v195 = vadd.f32 %v127, %v148
  %v196 = vadd.f32 %v128, %v148
  %v197 = vadd.f32 %v129, %v148
  %v198 = vadd.f32 %v130, %v148
  %v199 = vadd.f32 %v131, %v148
  %v200 = vadd.f32 %v132, %v148
  %v201 = vadd.f32 %v133, %v148
  %v202 = vadd.f32 %v134, %v148
  %v203 = vadd.f32 %v135, %v148
  %v204 = vadd.f32 %v136, %v148
  %v205 = vadd.f32 %v137, %v148
  %v206 = vadd.f32 %v138, %v148
  %v207 = vadd.f32 %v139, %v148
  %v208 = vadd.f32 %v140, %v148
  %v209 = vadd.f32 %v141, %v148
  %v210 = vadd.f32 %v142, %v148
  %v211 = vadd.f32 %v143, %v148
  %v212 = vadd.f32 %v144, %v148
  %v213 = vadd.f32 %v145, %v148
  %v214 = vmax.f32 %v150, 0.0
  %v215 = vmax.f32 %v151, 0.0
  %v216 = vmax.f32 %v152, 0.0
  %v217 = vmax.f32 %v153, 0.0
  %v218 = vmax.f32 %v154, 0.0
  %v219 = vmax.f32 %v155, 0.0
  %v220 = vmax.f32 %v156, 0.0
  %v221 = vmax.f32 %v157, 0.0
  %v222 = vmax.f32 %v158, 0.0
  %v223 = vmax.f32 %v159, 0.0
  %v224 = vmax.f32 %v160, 0.0
  %v225 = vmax.f32 %v161, 0.0
  %v226 = vmax.f32 %v162, 0.0
  %v227 = vmax.f32 %v163, 0.0
  %v228 = vmax.f32 %v164, 0.0
  %v229 = vmax.f32 %v165, 0.0
  %v230 = vmax.f32 %v166, 0.0
  %v231 = vmax.f32 %v167, 0.0
  %v232 = vmax.f32 %v168, 0.0
  %v233 = vmax.f32 %v169, 0.0
  %v234 = vmax.f32 %v170, 0.0
  %v235 = vmax.f32 %v171, 0.0
  %v236 = vmax.f32 %v172, 0.0
  %v237 = vmax.f32 %v173, 0.0
  %v238 = vmax.f32 %v174, 0.0
  %v239 = vmax.f32 %v175, 0.0
  %v240 = vmax.f32 %v176, 0.0
  %v241 = vmax.f32 %v177, 0.0
  %v242 = vmax.f32 %v178, 0.0
  %v243 = vmax.f32 %v179, 0.0
  %v244 = vmax.f32 %v180, 0.0
  %v245 = vmax.f32 %v181, 0.0
  %v246 = vmax.f32 %v182, 0.0
  %v247 = vmax.f32 %v183, 0.0
  %v248 = vmax.f32 %v184, 0.0
  %v249 = vmax.f32 %v185, 0.0
  %v250 = vmax.f32 %v186, 0.0
  %v251 = vmax.f32 %v187, 0.0
  %v252 = vmax.f32 %v188, 0.0
  %v253 = vmax.f32 %v189, 0.0
  %v254 = vmax.f32 %v190, 0.0
  %v255 = vmax.f32 %v191, 0.0
  %v256 = vmax.f32 %v192, 0.0
  %v257 = vmax.f32 %v193, 0.0
  %v258 = vmax.f32 %v194, 0.0
  %v259 = vmax.f32 %v195, 0.0
  %v260 = vmax.f32 %v196, 0.0
  %v261 = vmax.f32 %v197, 0.0
  %v262 = vmax.f32 %v198, 0.0
  %v263 = vmax.f32 %v199, 0.0
  %v264 = vmax.f32 %v200, 0.0
  %v265 = vmax.f32 %v201, 0.0
  %v266 = vmax.f32 %v202, 0.0
  %v267 = vmax.f32 %v203, 0.0
  %v268 = vmax.f32 %v204, 0.0
  %v269 = vmax.f32 %v205, 0.0
  %v270 = vmax.f32 %v206, 0.0
  %v271 = vmax.f32 %v207, 0.0
  %v272 = vmax.f32 %v208, 0.0
  %v273 = vmax.f32 %v209, 0.0
  %v274 = vmax.f32 %v210, 0.0
  %v275 = vmax.f32 %v211, 0.0
  %v276 = vmax.f32 %v212, 0.0
  %v277 = vmax.f32 %v213, 0.0
  %278 = vst [vmem:[%s3] sm:$0xff] %v214
  %279 = vst [vmem:[%s3 + $0x8] sm:$0xff] %v215
  %280 = vst [vmem:[%s3 + $0x10] sm:$0xff] %v216
  %281 = vst [vmem:[%s3 + $0x18] sm:$0xff] %v217
  %282 = vst [vmem:[%s3 + $0x20] sm:$0xff] %v218
  %283 = vst [vmem:[%s3 + $0x28] sm:$0xff] %v219
  %284 = vst [vmem:[%s3 + $0x30] sm:$0xff] %v220
  %285 = vst [vmem:[%s3 + $0x38] sm:$0xff] %v221
  %286 = vst [vmem:[%s3 + $0x40] sm:$0xff] %v222
  %287 = vst [vmem:[%s3 + $0x48] sm:$0xff] %v223
  %288 = vst [vmem:[%s3 + $0x50] sm:$0xff] %v224
  %289 = vst [vmem:[%s3 + $0x58] sm:$0xff] %v225
  %290 = vst [vmem:[%s3 + $0x60] sm:$0xff] %v226
  %291 = vst [vmem:[%s3 + $0x68] sm:$0xff] %v227
  %292 = vst [vmem:[%s3 + $0x70] sm:$0xff] %v228
  %293 = vst [vmem:[%s3 + $0x78] sm:$0xff] %v229
  %294 = vst [vmem:[%s3 + $0x80] sm:$0xff] %v230
  %295 = vst [vmem:[%s3 + $0x88] sm:$0xff] %v231
  %296 = vst [vmem:[%s3 + $0x90] sm:$0xff] %v232
  %297 = vst [vmem:[%s3 + $0x98] sm:$0xff] %v233
  %298 = vst [vmem:[%s3 + $0xa0] sm:$0xff] %v234
  %299 = vst [vmem:[%s3 + $0xa8] sm:$0xff] %v235
  %300 = vst [vmem:[%s3 + $0xb0] sm:$0xff] %v236
  %301 = vst [vmem:[%s3 + $0xb8] sm:$0xff] %v237
  %302 = vst [vmem:[%s3 + $0xc0] sm:$0xff] %v238
  %303 = vst [vmem:[%s3 + $0xc8] sm:$0xff] %v239
  %304 = vst [vmem:[%s3 + $0xd0] sm:$0xff] %v240
  %305 = vst [vmem:[%s3 + $0xd8] sm:$0xff] %v241
  %306 = vst [vmem:[%s3 + $0xe0] sm:$0xff] %v242
  %307 = vst [vmem:[%s3 + $0xe8] sm:$0xff] %v243
  %308 = vst [vmem:[%s3 + $0xf0] sm:$0xff] %v244
  %309 = vst [vmem:[%s3 + $0xf8] sm:$0xff] %v245
  %310 = vst [vmem:[%s3 + $0x100] sm:$0xff] %v246
  %311 = vst [vmem:[%s3 + $0x108] sm:$0xff] %v247
  %312 = vst [vmem:[%s3 + $0x110] sm:$0xff] %v248
  %313 = vst [vmem:[%s3 + $0x118] sm:$0xff] %v249
  %314 = vst [vmem:[%s3 + $0x120] sm:$0xff] %v250
  %315 = vst [vmem:[%s3 + $0x128] sm:$0xff] %v251
  %316 = vst [vmem:[%s3 + $0x130] sm:$0xff] %v252
  %317 = vst [vmem:[%s3 + $0x138] sm:$0xff] %v253
  %318 = vst [vmem:[%s3 + $0x140] sm:$0xff] %v254
  %319 = vst [vmem:[%s3 + $0x148] sm:$0xff] %v255
  %320 = vst [vmem:[%s3 + $0x150] sm:$0xff] %v256
  %321 = vst [vmem:[%s3 + $0x158] sm:$0xff] %v257
  %322 = vst [vmem:[%s3 + $0x160] sm:$0xff] %v258
  %323 = vst [vmem:[%s3 + $0x168] sm:$0xff] %v259
  %324 = vst [vmem:[%s3 + $0x170] sm:$0xff] %v260
  %325 = vst [vmem:[%s3 + $0x178] sm:$0xff] %v261
  %326 = vst [vmem:[%s3 + $0x180] sm:$0xff] %v262
  %327 = vst [vmem:[%s3 + $0x188] sm:$0xff] %v263
  %328 = vst [vmem:[%s3 + $0x190] sm:$0xff] %v264
  %329 = vst [vmem:[%s3 + $0x198] sm:$0xff] %v265
  %330 = vst [vmem:[%s3 + $0x1a0] sm:$0xff] %v266
  %331 = vst [vmem:[%s3 + $0x1a8] sm:$0xff] %v267
  %332 = vst [vmem:[%s3 + $0x1b0] sm:$0xff] %v268
  %333 = vst [vmem:[%s3 + $0x1b8] sm:$0xff] %v269
  %334 = vst [vmem:[%s3 + $0x1c0] sm:$0xff] %v270
  %335 = vst [vmem:[%s3 + $0x1c8] sm:$0xff] %v271
  %336 = vst [vmem:[%s3 + $0x1d0] sm:$0xff] %v272
  %337 = vst [vmem:[%s3 + $0x1d8] sm:$0xff] %v273
  %338 = vst [vmem:[%s3 + $0x1e0] sm:$0xff] %v274
  %339 = vst [vmem:[%s3 + $0x1e8] sm:$0xff] %v275
  %340 = vst [vmem:[%s3 + $0x1f0] sm:$0xff] %v276
  %341 = vst [vmem:[%s3 + $0x1f8] sm:$0xff] %v277
  // Predicated region
  $region14: #{dqn_forward.8} parent=0 // pred_check
    _
  $region15: #{dqn_forward.8} parent=0 // pred_check_branch
    %343 = sbr.rel (0) target = $region17
  $region16: #{dqn_forward.8} parent=0 // pred_region
    _
  $region17: #{dqn_forward.8} parent=0 // pred_fallthru
    _
  // Predicated region
  $region18: #{dqn_forward.8} parent=0 // pred_check
    _
  $region19: #{dqn_forward.8} parent=0 // pred_check_branch
    %345 = sbr.rel (0) target = $region21
  $region20: #{dqn_forward.8} parent=0 // pred_region
    _
  $region21: #{dqn_forward.8} parent=0 // pred_fallthru
    _

// kernel: dqn_forward.7
$region0: #{dqn_forward.7}
  #allocation0 [shape = 'u32[]', space=smem, size = 0x4, offset = 0x4, fixed_abs, tag = 'smem constant byte address 0x4 - core index']
  #allocation1 [shape = 'u32[72,128]{1,0:T(1,128)}', space=vmem, size = 0x9000, scoped, tag = 'internal scratch']
  %s0 = inlined_call_operand.vmem [shape: f32[512,128], index: 0, kind: input, shape index: {}]
  %s1 = inlined_call_operand.vmem [shape: f32[128,128], index: 1, kind: input, shape index: {}]
  %s2 = inlined_call_operand.vmem [shape: f32[512,128], index: 2, kind: output, shape index: {0}]
  %s3 = inlined_call_operand.vmem [shape: f32[8,128], index: 3, kind: output, shape index: {1}]
  %4 = xla_tuple %s2, %s3
  %s5 = sld [smem:[#allocation0]]
  $region30: #{dqn_forward.7} parent=0
    _
  %s7 = ssub.s32 1, %s5
  %s8 = scalar_select 0, %s7, %s5
  // Predicated region
  $region2: #{dqn_forward.7} parent=0 // pred_check
    _
  $region3: #{dqn_forward.7} parent=0 // pred_check_branch
    %10 = sbr.rel (0) target = $region5
  $region4: #{dqn_forward.7} parent=0 // pred_region
    _
  $region5: #{dqn_forward.7} parent=0 // pred_fallthru
    _
  // Predicated region
  $region6: #{dqn_forward.7} parent=0 // pred_check
    _
  $region7: #{dqn_forward.7} parent=0 // pred_check_branch
    %12 = sbr.rel (0) target = $region9
  $region8: #{dqn_forward.7} parent=0 // pred_region
    _
  $region9: #{dqn_forward.7} parent=0 // pred_fallthru
    _
  %v13 = vld [vmem:[%s0] sm:$0xff]
  %v14 = vld [vmem:[%s0 + $0x8] sm:$0xff]
  %v15 = vld [vmem:[%s0 + $0x10] sm:$0xff]
  %v16 = vld [vmem:[%s0 + $0x18] sm:$0xff]
  %v17 = vld [vmem:[%s0 + $0x20] sm:$0xff]
  %v18 = vld [vmem:[%s0 + $0x28] sm:$0xff]
  %v19 = vld [vmem:[%s0 + $0x30] sm:$0xff]
  %v20 = vld [vmem:[%s0 + $0x38] sm:$0xff]
  %v21 = vld [vmem:[%s0 + $0x40] sm:$0xff]
  %v22 = vld [vmem:[%s0 + $0x48] sm:$0xff]
  %v23 = vld [vmem:[%s0 + $0x50] sm:$0xff]
  %v24 = vld [vmem:[%s0 + $0x58] sm:$0xff]
  %v25 = vld [vmem:[%s0 + $0x60] sm:$0xff]
  %v26 = vld [vmem:[%s0 + $0x68] sm:$0xff]
  %v27 = vld [vmem:[%s0 + $0x70] sm:$0xff]
  %v28 = vld [vmem:[%s0 + $0x78] sm:$0xff]
  %v29 = vld [vmem:[%s0 + $0x80] sm:$0xff]
  %v30 = vld [vmem:[%s0 + $0x88] sm:$0xff]
  %v31 = vld [vmem:[%s0 + $0x90] sm:$0xff]
  %v32 = vld [vmem:[%s0 + $0x98] sm:$0xff]
  %v33 = vld [vmem:[%s0 + $0xa0] sm:$0xff]
  %v34 = vld [vmem:[%s0 + $0xa8] sm:$0xff]
  %v35 = vld [vmem:[%s0 + $0xb0] sm:$0xff]
  %v36 = vld [vmem:[%s0 + $0xb8] sm:$0xff]
  %v37 = vld [vmem:[%s0 + $0xc0] sm:$0xff]
  %v38 = vld [vmem:[%s0 + $0xc8] sm:$0xff]
  %v39 = vld [vmem:[%s0 + $0xd0] sm:$0xff]
  %v40 = vld [vmem:[%s0 + $0xd8] sm:$0xff]
  %v41 = vld [vmem:[%s0 + $0xe0] sm:$0xff]
  %v42 = vld [vmem:[%s0 + $0xe8] sm:$0xff]
  %v43 = vld [vmem:[%s0 + $0xf0] sm:$0xff]
  %v44 = vld [vmem:[%s0 + $0xf8] sm:$0xff]
  %v45 = vld [vmem:[%s0 + $0x100] sm:$0xff]
  %v46 = vld [vmem:[%s0 + $0x108] sm:$0xff]
  %v47 = vld [vmem:[%s0 + $0x110] sm:$0xff]
  %v48 = vld [vmem:[%s0 + $0x118] sm:$0xff]
  %v49 = vld [vmem:[%s0 + $0x120] sm:$0xff]
  %v50 = vld [vmem:[%s0 + $0x128] sm:$0xff]
  %v51 = vld [vmem:[%s0 + $0x130] sm:$0xff]
  %v52 = vld [vmem:[%s0 + $0x138] sm:$0xff]
  %v53 = vld [vmem:[%s0 + $0x140] sm:$0xff]
  %v54 = vld [vmem:[%s0 + $0x148] sm:$0xff]
  %v55 = vld [vmem:[%s0 + $0x150] sm:$0xff]
  %v56 = vld [vmem:[%s0 + $0x158] sm:$0xff]
  %v57 = vld [vmem:[%s0 + $0x160] sm:$0xff]
  %v58 = vld [vmem:[%s0 + $0x168] sm:$0xff]
  %v59 = vld [vmem:[%s0 + $0x170] sm:$0xff]
  %v60 = vld [vmem:[%s0 + $0x178] sm:$0xff]
  %v61 = vld [vmem:[%s0 + $0x180] sm:$0xff]
  %v62 = vld [vmem:[%s0 + $0x188] sm:$0xff]
  %v63 = vld [vmem:[%s0 + $0x190] sm:$0xff]
  %v64 = vld [vmem:[%s0 + $0x198] sm:$0xff]
  %v65 = vld [vmem:[%s0 + $0x1a0] sm:$0xff]
  %v66 = vld [vmem:[%s0 + $0x1a8] sm:$0xff]
  %v67 = vld [vmem:[%s0 + $0x1b0] sm:$0xff]
  %v68 = vld [vmem:[%s0 + $0x1b8] sm:$0xff]
  %v69 = vld [vmem:[%s0 + $0x1c0] sm:$0xff]
  %v70 = vld [vmem:[%s0 + $0x1c8] sm:$0xff]
  %v71 = vld [vmem:[%s0 + $0x1d0] sm:$0xff]
  %v72 = vld [vmem:[%s0 + $0x1d8] sm:$0xff]
  %v73 = vld [vmem:[%s0 + $0x1e0] sm:$0xff]
  %v74 = vld [vmem:[%s0 + $0x1e8] sm:$0xff]
  %v75 = vld [vmem:[%s0 + $0x1f0] sm:$0xff]
  %v76 = vld [vmem:[%s0 + $0x1f8] sm:$0xff]
  %v77 = vld [vmem:[%s1] sm:$0xff]
  %v78 = vld [vmem:[%s1 + $0x8] sm:$0xff]
  %v79 = vld [vmem:[%s1 + $0x10] sm:$0xff]
  %v80 = vld [vmem:[%s1 + $0x18] sm:$0xff]
  %v81 = vld [vmem:[%s1 + $0x20] sm:$0xff]
  %v82 = vld [vmem:[%s1 + $0x28] sm:$0xff]
  %v83 = vld [vmem:[%s1 + $0x30] sm:$0xff]
  %v84 = vld [vmem:[%s1 + $0x38] sm:$0xff]
  %v85 = vld [vmem:[%s1 + $0x40] sm:$0xff]
  %v86 = vld [vmem:[%s1 + $0x48] sm:$0xff]
  %v87 = vld [vmem:[%s1 + $0x50] sm:$0xff]
  %v88 = vld [vmem:[%s1 + $0x58] sm:$0xff]
  %v89 = vld [vmem:[%s1 + $0x60] sm:$0xff]
  %v90 = vld [vmem:[%s1 + $0x68] sm:$0xff]
  %v91 = vld [vmem:[%s1 + $0x70] sm:$0xff]
  %v92 = vld [vmem:[%s1 + $0x78] sm:$0xff]
  %93 = vmatpush.msra.mxu0 %v92
  %94 = vmatpush.msra.mxu0 %v91
  %95 = vmatpush.msra.mxu0 %v90
  %96 = vmatpush.msra.mxu0 %v89
  %97 = vmatpush.msra.mxu0 %v88
  %98 = vmatpush.msra.mxu0 %v87
  %99 = vmatpush.msra.mxu0 %v86
  %100 = vmatpush.msra.mxu0 %v85
  %101 = vmatpush.msra.mxu0 %v84
  %102 = vmatpush.msra.mxu0 %v83
  %103 = vmatpush.msra.mxu0 %v82
  %104 = vmatpush.msra.mxu0 %v81
  %105 = vmatpush.msra.mxu0 %v80
  %106 = vmatpush.msra.mxu0 %v79
  %107 = vmatpush.msra.mxu0 %v78
  %108 = vmatpush.msra.mxu0 %v77
  %109 = vmatmul.f32.gmra.mxu0 %v13
  %v110 = vpop.f32.mrf.mxu0
  %v111 = vadd.f32 0.0, %v110
  %112 = vmatmul.f32.gmra.mxu0 %v14
  %v113 = vpop.f32.mrf.mxu0
  %v114 = vadd.f32 0.0, %v113
  %115 = vmatmul.f32.gmra.mxu0 %v15
  %v116 = vpop.f32.mrf.mxu0
  %v117 = vadd.f32 0.0, %v116
  %118 = vmatmul.f32.gmra.mxu0 %v16
  %v119 = vpop.f32.mrf.mxu0
  %v120 = vadd.f32 0.0, %v119
  %121 = vmatmul.f32.gmra.mxu0 %v17
  %v122 = vpop.f32.mrf.mxu0
  %v123 = vadd.f32 0.0, %v122
  %124 = vmatmul.f32.gmra.mxu0 %v18
  %v125 = vpop.f32.mrf.mxu0
  %v126 = vadd.f32 0.0, %v125
  %127 = vmatmul.f32.gmra.mxu0 %v19
  %v128 = vpop.f32.mrf.mxu0
  %v129 = vadd.f32 0.0, %v128
  %130 = vmatmul.f32.gmra.mxu0 %v20
  %v131 = vpop.f32.mrf.mxu0
  %v132 = vadd.f32 0.0, %v131
  %133 = vmatmul.f32.gmra.mxu0 %v21
  %v134 = vpop.f32.mrf.mxu0
  %v135 = vadd.f32 0.0, %v134
  %136 = vmatmul.f32.gmra.mxu0 %v22
  %v137 = vpop.f32.mrf.mxu0
  %v138 = vadd.f32 0.0, %v137
  %139 = vmatmul.f32.gmra.mxu0 %v23
  %v140 = vpop.f32.mrf.mxu0
  %v141 = vadd.f32 0.0, %v140
  %142 = vmatmul.f32.gmra.mxu0 %v24
  %v143 = vpop.f32.mrf.mxu0
  %v144 = vadd.f32 0.0, %v143
  %145 = vmatmul.f32.gmra.mxu0 %v25
  %v146 = vpop.f32.mrf.mxu0
  %v147 = vadd.f32 0.0, %v146
  %148 = vmatmul.f32.gmra.mxu0 %v26
  %v149 = vpop.f32.mrf.mxu0
  %v150 = vadd.f32 0.0, %v149
  %151 = vmatmul.f32.gmra.mxu0 %v27
  %v152 = vpop.f32.mrf.mxu0
  %v153 = vadd.f32 0.0, %v152
  %154 = vmatmul.f32.gmra.mxu0 %v28
  %v155 = vpop.f32.mrf.mxu0
  %v156 = vadd.f32 0.0, %v155
  %157 = vmatmul.f32.gmra.mxu0 %v29
  %v158 = vpop.f32.mrf.mxu0
  %v159 = vadd.f32 0.0, %v158
  %160 = vmatmul.f32.gmra.mxu0 %v30
  %v161 = vpop.f32.mrf.mxu0
  %v162 = vadd.f32 0.0, %v161
  %163 = vmatmul.f32.gmra.mxu0 %v31
  %v164 = vpop.f32.mrf.mxu0
  %v165 = vadd.f32 0.0, %v164
  %166 = vmatmul.f32.gmra.mxu0 %v32
  %v167 = vpop.f32.mrf.mxu0
  %v168 = vadd.f32 0.0, %v167
  %169 = vmatmul.f32.gmra.mxu0 %v33
  %v170 = vpop.f32.mrf.mxu0
  %v171 = vadd.f32 0.0, %v170
  %172 = vmatmul.f32.gmra.mxu0 %v34
  %v173 = vpop.f32.mrf.mxu0
  %v174 = vadd.f32 0.0, %v173
  %175 = vmatmul.f32.gmra.mxu0 %v35
  %v176 = vpop.f32.mrf.mxu0
  %v177 = vadd.f32 0.0, %v176
  %178 = vmatmul.f32.gmra.mxu0 %v36
  %v179 = vpop.f32.mrf.mxu0
  %v180 = vadd.f32 0.0, %v179
  %181 = vmatmul.f32.gmra.mxu0 %v37
  %v182 = vpop.f32.mrf.mxu0
  %v183 = vadd.f32 0.0, %v182
  %184 = vmatmul.f32.gmra.mxu0 %v38
  %v185 = vpop.f32.mrf.mxu0
  %v186 = vadd.f32 0.0, %v185
  %187 = vmatmul.f32.gmra.mxu0 %v39
  %v188 = vpop.f32.mrf.mxu0
  %v189 = vadd.f32 0.0, %v188
  %190 = vmatmul.f32.gmra.mxu0 %v40
  %v191 = vpop.f32.mrf.mxu0
  %v192 = vadd.f32 0.0, %v191
  %193 = vmatmul.f32.gmra.mxu0 %v41
  %v194 = vpop.f32.mrf.mxu0
  %v195 = vadd.f32 0.0, %v194
  %196 = vmatmul.f32.gmra.mxu0 %v42
  %v197 = vpop.f32.mrf.mxu0
  %v198 = vadd.f32 0.0, %v197
  %199 = vmatmul.f32.gmra.mxu0 %v43
  %v200 = vpop.f32.mrf.mxu0
  %v201 = vadd.f32 0.0, %v200
  %202 = vmatmul.f32.gmra.mxu0 %v44
  %v203 = vpop.f32.mrf.mxu0
  %v204 = vadd.f32 0.0, %v203
  %205 = vmatmul.f32.gmra.mxu0 %v45
  %v206 = vpop.f32.mrf.mxu0
  %v207 = vadd.f32 0.0, %v206
  %208 = vmatmul.f32.gmra.mxu0 %v46
  %v209 = vpop.f32.mrf.mxu0
  %v210 = vadd.f32 0.0, %v209
  %211 = vmatmul.f32.gmra.mxu0 %v47
  %v212 = vpop.f32.mrf.mxu0
  %v213 = vadd.f32 0.0, %v212
  %214 = vmatmul.f32.gmra.mxu0 %v48
  %v215 = vpop.f32.mrf.mxu0
  %v216 = vadd.f32 0.0, %v215
  %217 = vmatmul.f32.gmra.mxu0 %v49
  %v218 = vpop.f32.mrf.mxu0
  %v219 = vadd.f32 0.0, %v218
  %220 = vmatmul.f32.gmra.mxu0 %v50
  %v221 = vpop.f32.mrf.mxu0
  %v222 = vadd.f32 0.0, %v221
  %223 = vmatmul.f32.gmra.mxu0 %v51
  %v224 = vpop.f32.mrf.mxu0
  %v225 = vadd.f32 0.0, %v224
  %226 = vmatmul.f32.gmra.mxu0 %v52
  %v227 = vpop.f32.mrf.mxu0
  %v228 = vadd.f32 0.0, %v227
  %229 = vmatmul.f32.gmra.mxu0 %v53
  %v230 = vpop.f32.mrf.mxu0
  %v231 = vadd.f32 0.0, %v230
  %232 = vmatmul.f32.gmra.mxu0 %v54
  %v233 = vpop.f32.mrf.mxu0
  %v234 = vadd.f32 0.0, %v233
  %235 = vmatmul.f32.gmra.mxu0 %v55
  %v236 = vpop.f32.mrf.mxu0
  %v237 = vadd.f32 0.0, %v236
  %238 = vmatmul.f32.gmra.mxu0 %v56
  %v239 = vpop.f32.mrf.mxu0
  %v240 = vadd.f32 0.0, %v239
  %241 = vmatmul.f32.gmra.mxu0 %v57
  %v242 = vpop.f32.mrf.mxu0
  %v243 = vadd.f32 0.0, %v242
  %244 = vmatmul.f32.gmra.mxu0 %v58
  %v245 = vpop.f32.mrf.mxu0
  %v246 = vadd.f32 0.0, %v245
  %247 = vmatmul.f32.gmra.mxu0 %v59
  %v248 = vpop.f32.mrf.mxu0
  %v249 = vadd.f32 0.0, %v248
  %250 = vmatmul.f32.gmra.mxu0 %v60
  %v251 = vpop.f32.mrf.mxu0
  %v252 = vadd.f32 0.0, %v251
  %253 = vmatmul.f32.gmra.mxu0 %v61
  %v254 = vpop.f32.mrf.mxu0
  %v255 = vadd.f32 0.0, %v254
  %256 = vmatmul.f32.gmra.mxu0 %v62
  %v257 = vpop.f32.mrf.mxu0
  %v258 = vadd.f32 0.0, %v257
  %259 = vmatmul.f32.gmra.mxu0 %v63
  %v260 = vpop.f32.mrf.mxu0
  %v261 = vadd.f32 0.0, %v260
  %262 = vmatmul.f32.gmra.mxu0 %v64
  %v263 = vpop.f32.mrf.mxu0
  %v264 = vadd.f32 0.0, %v263
  %265 = vmatmul.f32.gmra.mxu0 %v65
  %v266 = vpop.f32.mrf.mxu0
  %v267 = vadd.f32 0.0, %v266
  %268 = vmatmul.f32.gmra.mxu0 %v66
  %v269 = vpop.f32.mrf.mxu0
  %v270 = vadd.f32 0.0, %v269
  %271 = vmatmul.f32.gmra.mxu0 %v67
  %v272 = vpop.f32.mrf.mxu0
  %v273 = vadd.f32 0.0, %v272
  %274 = vmatmul.f32.gmra.mxu0 %v68
  %v275 = vpop.f32.mrf.mxu0
  %v276 = vadd.f32 0.0, %v275
  %277 = vmatmul.f32.gmra.mxu0 %v69
  %v278 = vpop.f32.mrf.mxu0
  %v279 = vadd.f32 0.0, %v278
  %280 = vmatmul.f32.gmra.mxu0 %v70
  %v281 = vpop.f32.mrf.mxu0
  %v282 = vadd.f32 0.0, %v281
  %283 = vmatmul.f32.gmra.mxu0 %v71
  %v284 = vpop.f32.mrf.mxu0
  %v285 = vadd.f32 0.0, %v284
  %286 = vmatmul.f32.gmra.mxu0 %v72
  %v287 = vpop.f32.mrf.mxu0
  %v288 = vadd.f32 0.0, %v287
  %289 = vmatmul.f32.gmra.mxu0 %v73
  %v290 = vpop.f32.mrf.mxu0
  %v291 = vadd.f32 0.0, %v290
  %292 = vmatmul.f32.gmra.mxu0 %v74
  %v293 = vpop.f32.mrf.mxu0
  %v294 = vadd.f32 0.0, %v293
  %295 = vmatmul.f32.gmra.mxu0 %v75
  %v296 = vpop.f32.mrf.mxu0
  %v297 = vadd.f32 0.0, %v296
  %298 = vmatmul.f32.gmra.mxu0 %v76
  %v299 = vpop.f32.mrf.mxu0
  %v300 = vadd.f32 0.0, %v299
  %301 = vdwg.mxu0
  %302 = vst [vmem:[%s2] sm:$0xff] %v111
  %303 = vst [vmem:[%s2 + $0x8] sm:$0xff] %v114
  %304 = vst [vmem:[%s2 + $0x10] sm:$0xff] %v117
  %305 = vst [vmem:[%s2 + $0x18] sm:$0xff] %v120
  %306 = vst [vmem:[%s2 + $0x20] sm:$0xff] %v123
  %307 = vst [vmem:[%s2 + $0x28] sm:$0xff] %v126
  %308 = vst [vmem:[%s2 + $0x30] sm:$0xff] %v129
  %309 = vst [vmem:[%s2 + $0x38] sm:$0xff] %v132
  %310 = vst [vmem:[%s2 + $0x40] sm:$0xff] %v135
  %311 = vst [vmem:[%s2 + $0x48] sm:$0xff] %v138
  %312 = vst [vmem:[%s2 + $0x50] sm:$0xff] %v141
  %313 = vst [vmem:[%s2 + $0x58] sm:$0xff] %v144
  %314 = vst [vmem:[%s2 + $0x60] sm:$0xff] %v147
  %315 = vst [vmem:[%s2 + $0x68] sm:$0xff] %v150
  %316 = vst [vmem:[%s2 + $0x70] sm:$0xff] %v153
  %317 = vst [vmem:[%s2 + $0x78] sm:$0xff] %v156
  %318 = vst [vmem:[%s2 + $0x80] sm:$0xff] %v159
  %319 = vst [vmem:[%s2 + $0x88] sm:$0xff] %v162
  %320 = vst [vmem:[%s2 + $0x90] sm:$0xff] %v165
  %321 = vst [vmem:[%s2 + $0x98] sm:$0xff] %v168
  %322 = vst [vmem:[%s2 + $0xa0] sm:$0xff] %v171
  %323 = vst [vmem:[%s2 + $0xa8] sm:$0xff] %v174
  %324 = vst [vmem:[%s2 + $0xb0] sm:$0xff] %v177
  %325 = vst [vmem:[%s2 + $0xb8] sm:$0xff] %v180
  %326 = vst [vmem:[%s2 + $0xc0] sm:$0xff] %v183
  %327 = vst [vmem:[%s2 + $0xc8] sm:$0xff] %v186
  %328 = vst [vmem:[%s2 + $0xd0] sm:$0xff] %v189
  %329 = vst [vmem:[%s2 + $0xd8] sm:$0xff] %v192
  %330 = vst [vmem:[%s2 + $0xe0] sm:$0xff] %v195
  %331 = vst [vmem:[%s2 + $0xe8] sm:$0xff] %v198
  %332 = vst [vmem:[%s2 + $0xf0] sm:$0xff] %v201
  %333 = vst [vmem:[%s2 + $0xf8] sm:$0xff] %v204
  %334 = vst [vmem:[%s2 + $0x100] sm:$0xff] %v207
  %335 = vst [vmem:[%s2 + $0x108] sm:$0xff] %v210
  %336 = vst [vmem:[%s2 + $0x110] sm:$0xff] %v213
  %337 = vst [vmem:[%s2 + $0x118] sm:$0xff] %v216
  %338 = vst [vmem:[%s2 + $0x120] sm:$0xff] %v219
  %339 = vst [vmem:[%s2 + $0x128] sm:$0xff] %v222
  %340 = vst [vmem:[%s2 + $0x130] sm:$0xff] %v225
  %341 = vst [vmem:[%s2 + $0x138] sm:$0xff] %v228
  %342 = vst [vmem:[%s2 + $0x140] sm:$0xff] %v231
  %343 = vst [vmem:[%s2 + $0x148] sm:$0xff] %v234
  %344 = vst [vmem:[%s2 + $0x150] sm:$0xff] %v237
  %345 = vst [vmem:[%s2 + $0x158] sm:$0xff] %v240
  %346 = vst [vmem:[%s2 + $0x160] sm:$0xff] %v243
  %347 = vst [vmem:[%s2 + $0x168] sm:$0xff] %v246
  %348 = vst [vmem:[%s2 + $0x170] sm:$0xff] %v249
  %349 = vst [vmem:[%s2 + $0x178] sm:$0xff] %v252
  %350 = vst [vmem:[%s2 + $0x180] sm:$0xff] %v255
  %351 = vst [vmem:[%s2 + $0x188] sm:$0xff] %v258
  %352 = vst [vmem:[%s2 + $0x190] sm:$0xff] %v261
  %353 = vst [vmem:[%s2 + $0x198] sm:$0xff] %v264
  %354 = vst [vmem:[%s2 + $0x1a0] sm:$0xff] %v267
  %355 = vst [vmem:[%s2 + $0x1a8] sm:$0xff] %v270
  %356 = vst [vmem:[%s2 + $0x1b0] sm:$0xff] %v273
  %357 = vst [vmem:[%s2 + $0x1b8] sm:$0xff] %v276
  %358 = vst [vmem:[%s2 + $0x1c0] sm:$0xff] %v279
  %359 = vst [vmem:[%s2 + $0x1c8] sm:$0xff] %v282
  %360 = vst [vmem:[%s2 + $0x1d0] sm:$0xff] %v285
  %361 = vst [vmem:[%s2 + $0x1d8] sm:$0xff] %v288
  %362 = vst [vmem:[%s2 + $0x1e0] sm:$0xff] %v291
  %363 = vst [vmem:[%s2 + $0x1e8] sm:$0xff] %v294
  %364 = vst [vmem:[%s2 + $0x1f0] sm:$0xff] %v297
  %365 = vst [vmem:[%s2 + $0x1f8] sm:$0xff] %v300
  %p366 = scmp.eq.s32.totalorder 0, 0
  // Predicated region
  $region10: #{dqn_forward.7} parent=0 // pred_check
    %p367 = pneg %p366
  $region11: #{dqn_forward.7} parent=0 // pred_check_branch
    %369 = sbr.rel (%p367) target = $region13
  $region12: #{dqn_forward.7} parent=0 // pred_region
    %370 = vst [vmem:[%s3] sm:$0xff] 0.0
  $region13: #{dqn_forward.7} parent=0 // pred_fallthru
    _
  %v371 = vld [vmem:[%s3] sm:$0x1]
  %v372 = vadd.f32 %v111, %v114
  %v373 = vadd.f32 %v372, %v117
  %v374 = vadd.f32 %v373, %v120
  %v375 = vadd.f32 %v374, %v123
  %v376 = vadd.f32 %v375, %v126
  %v377 = vadd.f32 %v376, %v129
  %v378 = vadd.f32 %v377, %v132
  %v379 = vadd.f32 %v378, %v135
  %v380 = vadd.f32 %v379, %v138
  %v381 = vadd.f32 %v380, %v141
  %v382 = vadd.f32 %v381, %v144
  %v383 = vadd.f32 %v382, %v147
  %v384 = vadd.f32 %v383, %v150
  %v385 = vadd.f32 %v384, %v153
  %v386 = vadd.f32 %v385, %v156
  %v387 = vadd.f32 %v386, %v159
  %v388 = vadd.f32 %v387, %v162
  %v389 = vadd.f32 %v388, %v165
  %v390 = vadd.f32 %v389, %v168
  %v391 = vadd.f32 %v390, %v171
  %v392 = vadd.f32 %v391, %v174
  %v393 = vadd.f32 %v392, %v177
  %v394 = vadd.f32 %v393, %v180
  %v395 = vadd.f32 %v394, %v183
  %v396 = vadd.f32 %v395, %v186
  %v397 = vadd.f32 %v396, %v189
  %v398 = vadd.f32 %v397, %v192
  %v399 = vadd.f32 %v398, %v195
  %v400 = vadd.f32 %v399, %v198
  %v401 = vadd.f32 %v400, %v201
  %v402 = vadd.f32 %v401, %v204
  %v403 = vadd.f32 %v402, %v207
  %v404 = vadd.f32 %v403, %v210
  %v405 = vadd.f32 %v404, %v213
  %v406 = vadd.f32 %v405, %v216
  %v407 = vadd.f32 %v406, %v219
  %v408 = vadd.f32 %v407, %v222
  %v409 = vadd.f32 %v408, %v225
  %v410 = vadd.f32 %v409, %v228
  %v411 = vadd.f32 %v410, %v231
  %v412 = vadd.f32 %v411, %v234
  %v413 = vadd.f32 %v412, %v237
  %v414 = vadd.f32 %v413, %v240
  %v415 = vadd.f32 %v414, %v243
  %v416 = vadd.f32 %v415, %v246
  %v417 = vadd.f32 %v416, %v249
  %v418 = vadd.f32 %v417, %v252
  %v419 = vadd.f32 %v418, %v255
  %v420 = vadd.f32 %v419, %v258
  %v421 = vadd.f32 %v420, %v261
  %v422 = vadd.f32 %v421, %v264
  %v423 = vadd.f32 %v422, %v267
  %v424 = vadd.f32 %v423, %v270
  %v425 = vadd.f32 %v424, %v273
  %v426 = vadd.f32 %v425, %v276
  %v427 = vadd.f32 %v426, %v279
  %v428 = vadd.f32 %v427, %v282
  %v429 = vadd.f32 %v428, %v285
  %v430 = vadd.f32 %v429, %v288
  %v431 = vadd.f32 %v430, %v291
  %v432 = vadd.f32 %v431, %v294
  %v433 = vadd.f32 %v432, %v297
  %v434 = vadd.f32 %v433, %v300
  %v435 = vrot.slane %v434, 4
  %v436 = vadd.f32 %v434, %v435
  %v437 = vrot.slane %v436, 2
  %v438 = vadd.f32 %v436, %v437
  %v439 = vrot.slane %v438, 1
  %v440 = vadd.f32 %v438, %v439
  %v441 = vadd.f32 %v371, %v440
  %442 = vst [vmem:[%s3] sm:$0x1] %v441
  %v443 = vld [vmem:[%s3 + $0x1] sm:$0x1]
  %v444 = vmul.f32 %v111, %v111
  %v445 = vmul.f32 %v114, %v114
  %v446 = vmul.f32 %v117, %v117
  %v447 = vmul.f32 %v120, %v120
  %v448 = vmul.f32 %v123, %v123
  %v449 = vmul.f32 %v126, %v126
  %v450 = vmul.f32 %v129, %v129
  %v451 = vmul.f32 %v132, %v132
  %v452 = vmul.f32 %v135, %v135
  %v453 = vmul.f32 %v138, %v138
  %v454 = vmul.f32 %v141, %v141
  %v455 = vmul.f32 %v144, %v144
  %v456 = vmul.f32 %v147, %v147
  %v457 = vmul.f32 %v150, %v150
  %v458 = vmul.f32 %v153, %v153
  %v459 = vmul.f32 %v156, %v156
  %v460 = vmul.f32 %v159, %v159
  %v461 = vmul.f32 %v162, %v162
  %v462 = vmul.f32 %v165, %v165
  %v463 = vmul.f32 %v168, %v168
  %v464 = vmul.f32 %v171, %v171
  %v465 = vmul.f32 %v174, %v174
  %v466 = vmul.f32 %v177, %v177
  %v467 = vmul.f32 %v180, %v180
  %v468 = vmul.f32 %v183, %v183
  %v469 = vmul.f32 %v186, %v186
  %v470 = vmul.f32 %v189, %v189
  %v471 = vmul.f32 %v192, %v192
  %v472 = vmul.f32 %v195, %v195
  %v473 = vmul.f32 %v198, %v198
  %v474 = vmul.f32 %v201, %v201
  %v475 = vmul.f32 %v204, %v204
  %v476 = vmul.f32 %v207, %v207
  %v477 = vmul.f32 %v210, %v210
  %v478 = vmul.f32 %v213, %v213
  %v479 = vmul.f32 %v216, %v216
  %v480 = vmul.f32 %v219, %v219
  %v481 = vmul.f32 %v222, %v222
  %v482 = vmul.f32 %v225, %v225
  %v483 = vmul.f32 %v228, %v228
  %v484 = vmul.f32 %v231, %v231
  %v485 = vmul.f32 %v234, %v234
  %v486 = vmul.f32 %v237, %v237
  %v487 = vmul.f32 %v240, %v240
  %v488 = vmul.f32 %v243, %v243
  %v489 = vmul.f32 %v246, %v246
  %v490 = vmul.f32 %v249, %v249
  %v491 = vmul.f32 %v252, %v252
  %v492 = vmul.f32 %v255, %v255
  %v493 = vmul.f32 %v258, %v258
  %v494 = vmul.f32 %v261, %v261
  %v495 = vmul.f32 %v264, %v264
  %v496 = vmul.f32 %v267, %v267
  %v497 = vmul.f32 %v270, %v270
  %v498 = vmul.f32 %v273, %v273
  %v499 = vmul.f32 %v276, %v276
  %v500 = vmul.f32 %v279, %v279
  %v501 = vmul.f32 %v282, %v282
  %v502 = vmul.f32 %v285, %v285
  %v503 = vmul.f32 %v288, %v288
  %v504 = vmul.f32 %v291, %v291
  %v505 = vmul.f32 %v294, %v294
  %v506 = vmul.f32 %v297, %v297
  %v507 = vmul.f32 %v300, %v300
  %v508 = vadd.f32 %v444, %v445
  %v509 = vadd.f32 %v508, %v446
  %v510 = vadd.f32 %v509, %v447
  %v511 = vadd.f32 %v510, %v448
  %v512 = vadd.f32 %v511, %v449
  %v513 = vadd.f32 %v512, %v450
  %v514 = vadd.f32 %v513, %v451
  %v515 = vadd.f32 %v514, %v452
  %v516 = vadd.f32 %v515, %v453
  %v517 = vadd.f32 %v516, %v454
  %v518 = vadd.f32 %v517, %v455
  %v519 = vadd.f32 %v518, %v456
  %v520 = vadd.f32 %v519, %v457
  %v521 = vadd.f32 %v520, %v458
  %v522 = vadd.f32 %v521, %v459
  %v523 = vadd.f32 %v522, %v460
  %v524 = vadd.f32 %v523, %v461
  %v525 = vadd.f32 %v524, %v462
  %v526 = vadd.f32 %v525, %v463
  %v527 = vadd.f32 %v526, %v464
  %v528 = vadd.f32 %v527, %v465
  %v529 = vadd.f32 %v528, %v466
  %v530 = vadd.f32 %v529, %v467
  %v531 = vadd.f32 %v530, %v468
  %v532 = vadd.f32 %v531, %v469
  %v533 = vadd.f32 %v532, %v470
  %v534 = vadd.f32 %v533, %v471
  %v535 = vadd.f32 %v534, %v472
  %v536 = vadd.f32 %v535, %v473
  %v537 = vadd.f32 %v536, %v474
  %v538 = vadd.f32 %v537, %v475
  %v539 = vadd.f32 %v538, %v476
  %v540 = vadd.f32 %v539, %v477
  %v541 = vadd.f32 %v540, %v478
  %v542 = vadd.f32 %v541, %v479
  %v543 = vadd.f32 %v542, %v480
  %v544 = vadd.f32 %v543, %v481
  %v545 = vadd.f32 %v544, %v482
  %v546 = vadd.f32 %v545, %v483
  %v547 = vadd.f32 %v546, %v484
  %v548 = vadd.f32 %v547, %v485
  %v549 = vadd.f32 %v548, %v486
  %v550 = vadd.f32 %v549, %v487
  %v551 = vadd.f32 %v550, %v488
  %v552 = vadd.f32 %v551, %v489
  %v553 = vadd.f32 %v552, %v490
  %v554 = vadd.f32 %v553, %v491
  %v555 = vadd.f32 %v554, %v492
  %v556 = vadd.f32 %v555, %v493
  %v557 = vadd.f32 %v556, %v494
  %v558 = vadd.f32 %v557, %v495
  %v559 = vadd.f32 %v558, %v496
  %v560 = vadd.f32 %v559, %v497
  %v561 = vadd.f32 %v560, %v498
  %v562 = vadd.f32 %v561, %v499
  %v563 = vadd.f32 %v562, %v500
  %v564 = vadd.f32 %v563, %v501
  %v565 = vadd.f32 %v564, %v502
  %v566 = vadd.f32 %v565, %v503
  %v567 = vadd.f32 %v566, %v504
  %v568 = vadd.f32 %v567, %v505
  %v569 = vadd.f32 %v568, %v506
  %v570 = vadd.f32 %v569, %v507
  %v571 = vrot.slane %v570, 4
  %v572 = vadd.f32 %v570, %v571
  %v573 = vrot.slane %v572, 2
  %v574 = vadd.f32 %v572, %v573
  %v575 = vrot.slane %v574, 1
  %v576 = vadd.f32 %v574, %v575
  %v577 = vadd.f32 %v443, %v576
  %578 = vst [vmem:[%s3 + $0x1] sm:$0x1] %v577
  // Predicated region
  $region14: #{dqn_forward.7} parent=0 // pred_check
    _
  $region15: #{dqn_forward.7} parent=0 // pred_check_branch
    %580 = sbr.rel (0) target = $region17
  $region16: #{dqn_forward.7} parent=0 // pred_region
    _
  $region17: #{dqn_forward.7} parent=0 // pred_fallthru
    _
  // Predicated region
  $region18: #{dqn_forward.7} parent=0 // pred_check
    _
  $region19: #{dqn_forward.7} parent=0 // pred_check_branch
    %582 = sbr.rel (0) target = $region21
  $region20: #{dqn_forward.7} parent=0 // pred_region
    _
  $region21: #{dqn_forward.7} parent=0 // pred_fallthru
    _
  // Predicated region
  $region22: #{dqn_forward.7} parent=0 // pred_check
    _
  $region23: #{dqn_forward.7} parent=0 // pred_check_branch
    %584 = sbr.rel (0) target = $region25
  $region24: #{dqn_forward.7} parent=0 // pred_region
    _
  $region25: #{dqn_forward.7} parent=0 // pred_fallthru
    _
  // Predicated region
  $region26: #{dqn_forward.7} parent=0 // pred_check
    _
  $region27: #{dqn_forward.7} parent=0 // pred_check_branch
    %586 = sbr.rel (0) target = $region29
  $region28: #{dqn_forward.7} parent=0 // pred_region
    _
  $region29: #{dqn_forward.7} parent=0 // pred_fallthru
    _

// kernel: dqn_forward.9
$region0: #{dqn_forward.9}
  #allocation0 [shape = 'u32[]', space=smem, size = 0x4, offset = 0x4, fixed_abs, tag = 'smem constant byte address 0x4 - core index']
  #allocation1 [shape = 'u32[72,128]{1,0:T(1,128)}', space=vmem, size = 0x9000, scoped, tag = 'internal scratch']
  %s0 = inlined_call_operand.vmem [shape: f32[72,400], index: 0, kind: input, shape index: {}]
  %s1 = inlined_call_operand.vmem [shape: f32[400,128], index: 1, kind: input, shape index: {}]
  %s2 = inlined_call_operand.vmem [shape: f32[72,128], index: 2, kind: output, shape index: {0}]
  %s3 = inlined_call_operand.vmem [shape: f32[8,128], index: 3, kind: output, shape index: {1}]
  %4 = xla_tuple %s2, %s3
  %s5 = sld [smem:[#allocation0]]
  $region30: #{dqn_forward.9} parent=0
    _
  %s7 = ssub.s32 1, %s5
  %s8 = scalar_select 0, %s7, %s5
  // Predicated region
  $region2: #{dqn_forward.9} parent=0 // pred_check
    _
  $region3: #{dqn_forward.9} parent=0 // pred_check_branch
    %10 = sbr.rel (0) target = $region5
  $region4: #{dqn_forward.9} parent=0 // pred_region
    _
  $region5: #{dqn_forward.9} parent=0 // pred_fallthru
    _
  // Predicated region
  $region6: #{dqn_forward.9} parent=0 // pred_check
    _
  $region7: #{dqn_forward.9} parent=0 // pred_check_branch
    %12 = sbr.rel (0) target = $region9
  $region8: #{dqn_forward.9} parent=0 // pred_region
    _
  $region9: #{dqn_forward.9} parent=0 // pred_fallthru
    _
  %v13 = vld [vmem:[%s0] sm:$0xff]
  %v14 = vld [vmem:[%s0 + $0x8] sm:$0xff]
  %v15 = vld [vmem:[%s0 + $0x10] sm:$0xff]
  %v16 = vld [vmem:[%s0 + $0x18] sm:$0xff]
  %v17 = vld [vmem:[%s0 + $0x20] sm:$0xff]
  %v18 = vld [vmem:[%s0 + $0x28] sm:$0xff]
  %v19 = vld [vmem:[%s0 + $0x30] sm:$0xff]
  %v20 = vld [vmem:[%s0 + $0x38] sm:$0xff]
  %v21 = vld [vmem:[%s0 + $0x40] sm:$0xff]
  %v22 = vld [vmem:[%s0 + $0x48] sm:$0xff]
  %v23 = vld [vmem:[%s0 + $0x50] sm:$0xff]
  %v24 = vld [vmem:[%s0 + $0x58] sm:$0xff]
  %v25 = vld [vmem:[%s0 + $0x60] sm:$0xff]
  %v26 = vld [vmem:[%s0 + $0x68] sm:$0xff]
  %v27 = vld [vmem:[%s0 + $0x70] sm:$0xff]
  %v28 = vld [vmem:[%s0 + $0x78] sm:$0xff]
  %v29 = vld [vmem:[%s0 + $0x80] sm:$0xff]
  %v30 = vld [vmem:[%s0 + $0x88] sm:$0xff]
  %v31 = vld [vmem:[%s0 + $0x90] sm:$0xff]
  %v32 = vld [vmem:[%s0 + $0x98] sm:$0xff]
  %v33 = vld [vmem:[%s0 + $0xa0] sm:$0xff]
  %v34 = vld [vmem:[%s0 + $0xa8] sm:$0xff]
  %v35 = vld [vmem:[%s0 + $0xb0] sm:$0xff]
  %v36 = vld [vmem:[%s0 + $0xb8] sm:$0xff]
  %v37 = vld [vmem:[%s0 + $0xc0] sm:$0xff]
  %v38 = vld [vmem:[%s0 + $0xc8] sm:$0xff]
  %v39 = vld [vmem:[%s0 + $0xd0] sm:$0xff]
  %v40 = vld [vmem:[%s0 + $0xd8] sm:$0xff]
  %v41 = vld [vmem:[%s0 + $0xe0] sm:$0xff]
  %v42 = vld [vmem:[%s0 + $0xe8] sm:$0xff]
  %v43 = vld [vmem:[%s0 + $0xf0] sm:$0xff]
  %v44 = vld [vmem:[%s0 + $0xf8] sm:$0xff]
  %v45 = vld [vmem:[%s0 + $0x100] sm:$0xff]
  %v46 = vld [vmem:[%s0 + $0x108] sm:$0xff]
  %v47 = vld [vmem:[%s0 + $0x110] sm:$0xff]
  %v48 = vld [vmem:[%s0 + $0x118] sm:$0xff]
  %v49 = vld [vmem:[%s1] sm:$0xff]
  %v50 = vld [vmem:[%s1 + $0x8] sm:$0xff]
  %v51 = vld [vmem:[%s1 + $0x10] sm:$0xff]
  %v52 = vld [vmem:[%s1 + $0x18] sm:$0xff]
  %v53 = vld [vmem:[%s1 + $0x20] sm:$0xff]
  %v54 = vld [vmem:[%s1 + $0x28] sm:$0xff]
  %v55 = vld [vmem:[%s1 + $0x30] sm:$0xff]
  %v56 = vld [vmem:[%s1 + $0x38] sm:$0xff]
  %v57 = vld [vmem:[%s1 + $0x40] sm:$0xff]
  %v58 = vld [vmem:[%s1 + $0x48] sm:$0xff]
  %v59 = vld [vmem:[%s1 + $0x50] sm:$0xff]
  %v60 = vld [vmem:[%s1 + $0x58] sm:$0xff]
  %v61 = vld [vmem:[%s1 + $0x60] sm:$0xff]
  %v62 = vld [vmem:[%s1 + $0x68] sm:$0xff]
  %v63 = vld [vmem:[%s1 + $0x70] sm:$0xff]
  %v64 = vld [vmem:[%s1 + $0x78] sm:$0xff]
  %v65 = vld [vmem:[%s1 + $0x80] sm:$0xff]
  %v66 = vld [vmem:[%s1 + $0x88] sm:$0xff]
  %v67 = vld [vmem:[%s1 + $0x90] sm:$0xff]
  %v68 = vld [vmem:[%s1 + $0x98] sm:$0xff]
  %v69 = vld [vmem:[%s1 + $0xa0] sm:$0xff]
  %v70 = vld [vmem:[%s1 + $0xa8] sm:$0xff]
  %v71 = vld [vmem:[%s1 + $0xb0] sm:$0xff]
  %v72 = vld [vmem:[%s1 + $0xb8] sm:$0xff]
  %v73 = vld [vmem:[%s1 + $0xc0] sm:$0xff]
  %v74 = vld [vmem:[%s1 + $0xc8] sm:$0xff]
  %v75 = vld [vmem:[%s1 + $0xd0] sm:$0xff]
  %v76 = vld [vmem:[%s1 + $0xd8] sm:$0xff]
  %v77 = vld [vmem:[%s1 + $0xe0] sm:$0xff]
  %v78 = vld [vmem:[%s1 + $0xe8] sm:$0xff]
  %v79 = vld [vmem:[%s1 + $0xf0] sm:$0xff]
  %v80 = vld [vmem:[%s1 + $0xf8] sm:$0xff]
  %v81 = vld [vmem:[%s1 + $0x100] sm:$0xff]
  %v82 = vld [vmem:[%s1 + $0x108] sm:$0xff]
  %v83 = vld [vmem:[%s1 + $0x110] sm:$0xff]
  %v84 = vld [vmem:[%s1 + $0x118] sm:$0xff]
  %v85 = vld [vmem:[%s1 + $0x120] sm:$0xff]
  %v86 = vld [vmem:[%s1 + $0x128] sm:$0xff]
  %v87 = vld [vmem:[%s1 + $0x130] sm:$0xff]
  %v88 = vld [vmem:[%s1 + $0x138] sm:$0xff]
  %v89 = vld [vmem:[%s1 + $0x140] sm:$0xff]
  %v90 = vld [vmem:[%s1 + $0x148] sm:$0xff]
  %v91 = vld [vmem:[%s1 + $0x150] sm:$0xff]
  %v92 = vld [vmem:[%s1 + $0x158] sm:$0xff]
  %v93 = vld [vmem:[%s1 + $0x160] sm:$0xff]
  %v94 = vld [vmem:[%s1 + $0x168] sm:$0xff]
  %v95 = vld [vmem:[%s1 + $0x170] sm:$0xff]
  %v96 = vld [vmem:[%s1 + $0x178] sm:$0xff]
  %v97 = vld [vmem:[%s1 + $0x180] sm:$0xff]
  %v98 = vld [vmem:[%s1 + $0x188] sm:$0xff]
  %vm99 = vcmask 130048
  %v101 = vsel %vm99, %v16, 0
  %v104 = vsel %vm99, %v20, 0
  %v107 = vsel %vm99, %v24, 0
  %v110 = vsel %vm99, %v28, 0
  %v113 = vsel %vm99, %v32, 0
  %v116 = vsel %vm99, %v36, 0
  %v119 = vsel %vm99, %v40, 0
  %v122 = vsel %vm99, %v44, 0
  %v125 = vsel %vm99, %v48, 0
  %127 = vmatpush.msra.mxu0 %v64
  %128 = vmatpush.msra.mxu0 %v63
  %129 = vmatpush.msra.mxu0 %v62
  %130 = vmatpush.msra.mxu0 %v61
  %131 = vmatpush.msra.mxu0 %v60
  %132 = vmatpush.msra.mxu0 %v59
  %133 = vmatpush.msra.mxu0 %v58
  %134 = vmatpush.msra.mxu0 %v57
  %135 = vmatpush.msra.mxu0 %v56
  %136 = vmatpush.msra.mxu0 %v55
  %137 = vmatpush.msra.mxu0 %v54
  %138 = vmatpush.msra.mxu0 %v53
  %139 = vmatpush.msra.mxu0 %v52
  %140 = vmatpush.msra.mxu0 %v51
  %141 = vmatpush.msra.mxu0 %v50
  %142 = vmatpush.msra.mxu0 %v49
  %143 = vmatmul.f32.gmra.mxu0 %v13
  %v144 = vpop.f32.mrf.mxu0
  %v145 = vadd.f32 0.0, %v144
  %146 = vmatmul.f32.gmra.mxu0 %v17
  %v147 = vpop.f32.mrf.mxu0
  %v148 = vadd.f32 0.0, %v147
  %149 = vmatmul.f32.gmra.mxu0 %v21
  %v150 = vpop.f32.mrf.mxu0
  %v151 = vadd.f32 0.0, %v150
  %152 = vmatmul.f32.gmra.mxu0 %v25
  %v153 = vpop.f32.mrf.mxu0
  %v154 = vadd.f32 0.0, %v153
  %155 = vmatmul.f32.gmra.mxu0 %v29
  %v156 = vpop.f32.mrf.mxu0
  %v157 = vadd.f32 0.0, %v156
  %158 = vmatmul.f32.gmra.mxu0 %v33
  %v159 = vpop.f32.mrf.mxu0
  %v160 = vadd.f32 0.0, %v159
  %161 = vmatmul.f32.gmra.mxu0 %v37
  %v162 = vpop.f32.mrf.mxu0
  %v163 = vadd.f32 0.0, %v162
  %164 = vmatmul.f32.gmra.mxu0 %v41
  %v165 = vpop.f32.mrf.mxu0
  %v166 = vadd.f32 0.0, %v165
  %167 = vmatmul.f32.gmra.mxu0 %v45
  %v168 = vpop.f32.mrf.mxu0
  %v169 = vadd.f32 0.0, %v168
  %170 = vdwg.mxu0
  %171 = vmatpush.msra.mxu0 %v80
  %172 = vmatpush.msra.mxu0 %v79
  %173 = vmatpush.msra.mxu0 %v78
  %174 = vmatpush.msra.mxu0 %v77
  %175 = vmatpush.msra.mxu0 %v76
  %176 = vmatpush.msra.mxu0 %v75
  %177 = vmatpush.msra.mxu0 %v74
  %178 = vmatpush.msra.mxu0 %v73
  %179 = vmatpush.msra.mxu0 %v72
  %180 = vmatpush.msra.mxu0 %v71
  %181 = vmatpush.msra.mxu0 %v70
  %182 = vmatpush.msra.mxu0 %v69
  %183 = vmatpush.msra.mxu0 %v68
  %184 = vmatpush.msra.mxu0 %v67
  %185 = vmatpush.msra.mxu0 %v66
  %186 = vmatpush.msra.mxu0 %v65
  %187 = vmatmul.f32.gmra.mxu0 %v14
  %v188 = vpop.f32.mrf.mxu0
  %v189 = vadd.f32 %v145, %v188
  %190 = vmatmul.f32.gmra.mxu0 %v18
  %v191 = vpop.f32.mrf.mxu0
  %v192 = vadd.f32 %v148, %v191
  %193 = vmatmul.f32.gmra.mxu0 %v22
  %v194 = vpop.f32.mrf.mxu0
  %v195 = vadd.f32 %v151, %v194
  %196 = vmatmul.f32.gmra.mxu0 %v26
  %v197 = vpop.f32.mrf.mxu0
  %v198 = vadd.f32 %v154, %v197
  %199 = vmatmul.f32.gmra.mxu0 %v30
  %v200 = vpop.f32.mrf.mxu0
  %v201 = vadd.f32 %v157, %v200
  %202 = vmatmul.f32.gmra.mxu0 %v34
  %v203 = vpop.f32.mrf.mxu0
  %v204 = vadd.f32 %v160, %v203
  %205 = vmatmul.f32.gmra.mxu0 %v38
  %v206 = vpop.f32.mrf.mxu0
  %v207 = vadd.f32 %v163, %v206
  %208 = vmatmul.f32.gmra.mxu0 %v42
  %v209 = vpop.f32.mrf.mxu0
  %v210 = vadd.f32 %v166, %v209
  %211 = vmatmul.f32.gmra.mxu0 %v46
  %v212 = vpop.f32.mrf.mxu0
  %v213 = vadd.f32 %v169, %v212
  %214 = vdwg.mxu0
  %215 = vmatpush.msra.mxu0 %v96
  %216 = vmatpush.msra.mxu0 %v95
  %217 = vmatpush.msra.mxu0 %v94
  %218 = vmatpush.msra.mxu0 %v93
  %219 = vmatpush.msra.mxu0 %v92
  %220 = vmatpush.msra.mxu0 %v91
  %221 = vmatpush.msra.mxu0 %v90
  %222 = vmatpush.msra.mxu0 %v89
  %223 = vmatpush.msra.mxu0 %v88
  %224 = vmatpush.msra.mxu0 %v87
  %225 = vmatpush.msra.mxu0 %v86
  %226 = vmatpush.msra.mxu0 %v85
  %227 = vmatpush.msra.mxu0 %v84
  %228 = vmatpush.msra.mxu0 %v83
  %229 = vmatpush.msra.mxu0 %v82
  %230 = vmatpush.msra.mxu0 %v81
  %231 = vmatmul.f32.gmra.mxu0 %v15
  %v232 = vpop.f32.mrf.mxu0
  %v233 = vadd.f32 %v189, %v232
  %234 = vmatmul.f32.gmra.mxu0 %v19
  %v235 = vpop.f32.mrf.mxu0
  %v236 = vadd.f32 %v192, %v235
  %237 = vmatmul.f32.gmra.mxu0 %v23
  %v238 = vpop.f32.mrf.mxu0
  %v239 = vadd.f32 %v195, %v238
  %240 = vmatmul.f32.gmra.mxu0 %v27
  %v241 = vpop.f32.mrf.mxu0
  %v242 = vadd.f32 %v198, %v241
  %243 = vmatmul.f32.gmra.mxu0 %v31
  %v244 = vpop.f32.mrf.mxu0
  %v245 = vadd.f32 %v201, %v244
  %246 = vmatmul.f32.gmra.mxu0 %v35
  %v247 = vpop.f32.mrf.mxu0
  %v248 = vadd.f32 %v204, %v247
  %249 = vmatmul.f32.gmra.mxu0 %v39
  %v250 = vpop.f32.mrf.mxu0
  %v251 = vadd.f32 %v207, %v250
  %252 = vmatmul.f32.gmra.mxu0 %v43
  %v253 = vpop.f32.mrf.mxu0
  %v254 = vadd.f32 %v210, %v253
  %255 = vmatmul.f32.gmra.mxu0 %v47
  %v256 = vpop.f32.mrf.mxu0
  %v257 = vadd.f32 %v213, %v256
  %258 = vdwg.mxu0
  %259 = vmatpush.msra.mxu0 0.0
  %260 = vmatpush.msra.mxu0 0.0
  %261 = vmatpush.msra.mxu0 0.0
  %262 = vmatpush.msra.mxu0 0.0
  %263 = vmatpush.msra.mxu0 0.0
  %264 = vmatpush.msra.mxu0 0.0
  %265 = vmatpush.msra.mxu0 0.0
  %266 = vmatpush.msra.mxu0 0.0
  %267 = vmatpush.msra.mxu0 0.0
  %268 = vmatpush.msra.mxu0 0.0
  %269 = vmatpush.msra.mxu0 0.0
  %270 = vmatpush.msra.mxu0 0.0
  %271 = vmatpush.msra.mxu0 0.0
  %272 = vmatpush.msra.mxu0 0.0
  %273 = vmatpush.msra.mxu0 %v98
  %274 = vmatpush.msra.mxu0 %v97
  %275 = vmatmul.f32.gmra.mxu0 %v101
  %v276 = vpop.f32.mrf.mxu0
  %v277 = vadd.f32 %v233, %v276
  %278 = vmatmul.f32.gmra.mxu0 %v104
  %v279 = vpop.f32.mrf.mxu0
  %v280 = vadd.f32 %v236, %v279
  %281 = vmatmul.f32.gmra.mxu0 %v107
  %v282 = vpop.f32.mrf.mxu0
  %v283 = vadd.f32 %v239, %v282
  %284 = vmatmul.f32.gmra.mxu0 %v110
  %v285 = vpop.f32.mrf.mxu0
  %v286 = vadd.f32 %v242, %v285
  %287 = vmatmul.f32.gmra.mxu0 %v113
  %v288 = vpop.f32.mrf.mxu0
  %v289 = vadd.f32 %v245, %v288
  %290 = vmatmul.f32.gmra.mxu0 %v116
  %v291 = vpop.f32.mrf.mxu0
  %v292 = vadd.f32 %v248, %v291
  %293 = vmatmul.f32.gmra.mxu0 %v119
  %v294 = vpop.f32.mrf.mxu0
  %v295 = vadd.f32 %v251, %v294
  %296 = vmatmul.f32.gmra.mxu0 %v122
  %v297 = vpop.f32.mrf.mxu0
  %v298 = vadd.f32 %v254, %v297
  %299 = vmatmul.f32.gmra.mxu0 %v125
  %v300 = vpop.f32.mrf.mxu0
  %v301 = vadd.f32 %v257, %v300
  %302 = vdwg.mxu0
  %303 = vst [vmem:[%s2] sm:$0xff] %v277
  %304 = vst [vmem:[%s2 + $0x8] sm:$0xff] %v280
  %305 = vst [vmem:[%s2 + $0x10] sm:$0xff] %v283
  %306 = vst [vmem:[%s2 + $0x18] sm:$0xff] %v286
  %307 = vst [vmem:[%s2 + $0x20] sm:$0xff] %v289
  %308 = vst [vmem:[%s2 + $0x28] sm:$0xff] %v292
  %309 = vst [vmem:[%s2 + $0x30] sm:$0xff] %v295
  %310 = vst [vmem:[%s2 + $0x38] sm:$0xff] %v298
  %311 = vst [vmem:[%s2 + $0x40] sm:$0xff] %v301
  %p312 = scmp.eq.s32.totalorder 0, 0
  // Predicated region
  $region10: #{dqn_forward.9} parent=0 // pred_check
    %p313 = pneg %p312
  $region11: #{dqn_forward.9} parent=0 // pred_check_branch
    %315 = sbr.rel (%p313) target = $region13
  $region12: #{dqn_forward.9} parent=0 // pred_region
    %316 = vst [vmem:[%s3] sm:$0xff] 0.0
  $region13: #{dqn_forward.9} parent=0 // pred_fallthru
    _
  %v317 = vld [vmem:[%s3] sm:$0x1]
  %v318 = vadd.f32 %v277, %v280
  %v319 = vadd.f32 %v318, %v283
  %v320 = vadd.f32 %v319, %v286
  %v321 = vadd.f32 %v320, %v289
  %v322 = vadd.f32 %v321, %v292
  %v323 = vadd.f32 %v322, %v295
  %v324 = vadd.f32 %v323, %v298
  %v325 = vadd.f32 %v324, %v301
  %v326 = vrot.slane %v325, 4
  %v327 = vadd.f32 %v325, %v326
  %v328 = vrot.slane %v327, 2
  %v329 = vadd.f32 %v327, %v328
  %v330 = vrot.slane %v329, 1
  %v331 = vadd.f32 %v329, %v330
  %v332 = vadd.f32 %v317, %v331
  %333 = vst [vmem:[%s3] sm:$0x1] %v332
  %v334 = vld [vmem:[%s3 + $0x1] sm:$0x1]
  %v335 = vmul.f32 %v277, %v277
  %v336 = vmul.f32 %v280, %v280
  %v337 = vmul.f32 %v283, %v283
  %v338 = vmul.f32 %v286, %v286
  %v339 = vmul.f32 %v289, %v289
  %v340 = vmul.f32 %v292, %v292
  %v341 = vmul.f32 %v295, %v295
  %v342 = vmul.f32 %v298, %v298
  %v343 = vmul.f32 %v301, %v301
  %v344 = vadd.f32 %v335, %v336
  %v345 = vadd.f32 %v344, %v337
  %v346 = vadd.f32 %v345, %v338
  %v347 = vadd.f32 %v346, %v339
  %v348 = vadd.f32 %v347, %v340
  %v349 = vadd.f32 %v348, %v341
  %v350 = vadd.f32 %v349, %v342
  %v351 = vadd.f32 %v350, %v343
  %v352 = vrot.slane %v351, 4
  %v353 = vadd.f32 %v351, %v352
  %v354 = vrot.slane %v353, 2
  %v355 = vadd.f32 %v353, %v354
  %v356 = vrot.slane %v355, 1
  %v357 = vadd.f32 %v355, %v356
  %v358 = vadd.f32 %v334, %v357
  %359 = vst [vmem:[%s3 + $0x1] sm:$0x1] %v358
  // Predicated region
  $region14: #{dqn_forward.9} parent=0 // pred_check
    _
  $region15: #{dqn_forward.9} parent=0 // pred_check_branch
    %361 = sbr.rel (0) target = $region17
  $region16: #{dqn_forward.9} parent=0 // pred_region
    _
  $region17: #{dqn_forward.9} parent=0 // pred_fallthru
    _
  // Predicated region
  $region18: #{dqn_forward.9} parent=0 // pred_check
    _
  $region19: #{dqn_forward.9} parent=0 // pred_check_branch
    %363 = sbr.rel (0) target = $region21
  $region20: #{dqn_forward.9} parent=0 // pred_region
    _
  $region21: #{dqn_forward.9} parent=0 // pred_fallthru
    _
  // Predicated region
  $region22: #{dqn_forward.9} parent=0 // pred_check
    _
  $region23: #{dqn_forward.9} parent=0 // pred_check_branch
    %365 = sbr.rel (0) target = $region25
  $region24: #{dqn_forward.9} parent=0 // pred_region
    _
  $region25: #{dqn_forward.9} parent=0 // pred_fallthru
    _
  // Predicated region
  $region26: #{dqn_forward.9} parent=0 // pred_check
    _
  $region27: #{dqn_forward.9} parent=0 // pred_check_branch
    %367 = sbr.rel (0) target = $region29
  $region28: #{dqn_forward.9} parent=0 // pred_region
    _
  $region29: #{dqn_forward.9} parent=0 // pred_fallthru
    _

// kernel: dqn_forward.10
$region0: #{dqn_forward.10}
  #allocation0 [shape = 'u32[]', space=smem, size = 0x4, offset = 0x4, fixed_abs, tag = 'smem constant byte address 0x4 - core index']
  #allocation1 [shape = 'u32[72,128]{1,0:T(1,128)}', space=vmem, size = 0x9000, scoped, tag = 'internal scratch']
  %s0 = inlined_call_operand.vmem [shape: f32[72,128], index: 0, kind: input, shape index: {}]
  %s1 = inlined_call_operand.vmem [shape: f32[1,128], index: 1, kind: input, shape index: {}]
  %s2 = inlined_call_operand.vmem [shape: f32[1,128], index: 2, kind: input, shape index: {}]
  %s3 = inlined_call_operand.vmem [shape: f32[72,128], index: 3, kind: output, shape index: {}]
  %s4 = sld [smem:[#allocation0]]
  $region22: #{dqn_forward.10} parent=0
    _
  %s6 = ssub.s32 1, %s4
  %s7 = scalar_select 0, %s6, %s4
  // Predicated region
  $region2: #{dqn_forward.10} parent=0 // pred_check
    _
  $region3: #{dqn_forward.10} parent=0 // pred_check_branch
    %9 = sbr.rel (0) target = $region5
  $region4: #{dqn_forward.10} parent=0 // pred_region
    _
  $region5: #{dqn_forward.10} parent=0 // pred_fallthru
    _
  // Predicated region
  $region6: #{dqn_forward.10} parent=0 // pred_check
    _
  $region7: #{dqn_forward.10} parent=0 // pred_check_branch
    %11 = sbr.rel (0) target = $region9
  $region8: #{dqn_forward.10} parent=0 // pred_region
    _
  $region9: #{dqn_forward.10} parent=0 // pred_fallthru
    _
  // Predicated region
  $region10: #{dqn_forward.10} parent=0 // pred_check
    _
  $region11: #{dqn_forward.10} parent=0 // pred_check_branch
    %13 = sbr.rel (0) target = $region13
  $region12: #{dqn_forward.10} parent=0 // pred_region
    _
  $region13: #{dqn_forward.10} parent=0 // pred_fallthru
    _
  %v14 = vld [vmem:[%s0] sm:$0xff]
  %v15 = vld [vmem:[%s0 + $0x8] sm:$0xff]
  %v16 = vld [vmem:[%s0 + $0x10] sm:$0xff]
  %v17 = vld [vmem:[%s0 + $0x18] sm:$0xff]
  %v18 = vld [vmem:[%s0 + $0x20] sm:$0xff]
  %v19 = vld [vmem:[%s0 + $0x28] sm:$0xff]
  %v20 = vld [vmem:[%s0 + $0x30] sm:$0xff]
  %v21 = vld [vmem:[%s0 + $0x38] sm:$0xff]
  %v22 = vld [vmem:[%s0 + $0x40] sm:$0xff]
  %v23 = vld [vmem:[%s1] sm:$0x1]
  %v25 = vperm.slane %v23, 0
  %v27 = vmul.f32 %v14, %v25
  %v28 = vmul.f32 %v15, %v25
  %v29 = vmul.f32 %v16, %v25
  %v30 = vmul.f32 %v17, %v25
  %v31 = vmul.f32 %v18, %v25
  %v32 = vmul.f32 %v19, %v25
  %v33 = vmul.f32 %v20, %v25
  %v34 = vmul.f32 %v21, %v25
  %v35 = vmul.f32 %v22, %v25
  %v36 = vld [vmem:[%s2] sm:$0x1]
  %v38 = vperm.slane %v36, 0
  %v40 = vadd.f32 %v27, %v38
  %v41 = vadd.f32 %v28, %v38
  %v42 = vadd.f32 %v29, %v38
  %v43 = vadd.f32 %v30, %v38
  %v44 = vadd.f32 %v31, %v38
  %v45 = vadd.f32 %v32, %v38
  %v46 = vadd.f32 %v33, %v38
  %v47 = vadd.f32 %v34, %v38
  %v48 = vadd.f32 %v35, %v38
  %v49 = vmax.f32 %v40, 0.0
  %v50 = vmax.f32 %v41, 0.0
  %v51 = vmax.f32 %v42, 0.0
  %v52 = vmax.f32 %v43, 0.0
  %v53 = vmax.f32 %v44, 0.0
  %v54 = vmax.f32 %v45, 0.0
  %v55 = vmax.f32 %v46, 0.0
  %v56 = vmax.f32 %v47, 0.0
  %v57 = vmax.f32 %v48, 0.0
  %58 = vst [vmem:[%s3] sm:$0xff] %v49
  %59 = vst [vmem:[%s3 + $0x8] sm:$0xff] %v50
  %60 = vst [vmem:[%s3 + $0x10] sm:$0xff] %v51
  %61 = vst [vmem:[%s3 + $0x18] sm:$0xff] %v52
  %62 = vst [vmem:[%s3 + $0x20] sm:$0xff] %v53
  %63 = vst [vmem:[%s3 + $0x28] sm:$0xff] %v54
  %64 = vst [vmem:[%s3 + $0x30] sm:$0xff] %v55
  %65 = vst [vmem:[%s3 + $0x38] sm:$0xff] %v56
  %66 = vst [vmem:[%s3 + $0x40] sm:$0xff] %v57
  // Predicated region
  $region14: #{dqn_forward.10} parent=0 // pred_check
    _
  $region15: #{dqn_forward.10} parent=0 // pred_check_branch
    %68 = sbr.rel (0) target = $region17
  $region16: #{dqn_forward.10} parent=0 // pred_region
    _
  $region17: #{dqn_forward.10} parent=0 // pred_fallthru
    _
  // Predicated region
  $region18: #{dqn_forward.10} parent=0 // pred_check
    _
  $region19: #{dqn_forward.10} parent=0 // pred_check_branch
    %70 = sbr.rel (0) target = $region21
  $region20: #{dqn_forward.10} parent=0 // pred_region
    _
  $region21: #{dqn_forward.10} parent=0 // pred_fallthru
    _

// kernel: dqn_forward.12
$region0: #{dqn_forward.12}
  #allocation0 [shape = 'u32[]', space=smem, size = 0x4, offset = 0x4, fixed_abs, tag = 'smem constant byte address 0x4 - core index']
  #allocation1 [shape = 'u32[72,128]{1,0:T(1,128)}', space=vmem, size = 0x9000, scoped, tag = 'internal scratch']
  %s0 = inlined_call_operand.vmem [shape: f32[8,128], index: 0, kind: input, shape index: {}]
  %s1 = inlined_call_operand.vmem [shape: f32[1,128], index: 1, kind: input, shape index: {}]
  %s2 = inlined_call_operand.vmem [shape: f32[1,128], index: 2, kind: input, shape index: {}]
  %s3 = inlined_call_operand.vmem [shape: f32[8,128], index: 3, kind: output, shape index: {}]
  %s4 = sld [smem:[#allocation0]]
  $region22: #{dqn_forward.12} parent=0
    _
  %s6 = ssub.s32 1, %s4
  %s7 = scalar_select 0, %s6, %s4
  // Predicated region
  $region2: #{dqn_forward.12} parent=0 // pred_check
    _
  $region3: #{dqn_forward.12} parent=0 // pred_check_branch
    %9 = sbr.rel (0) target = $region5
  $region4: #{dqn_forward.12} parent=0 // pred_region
    _
  $region5: #{dqn_forward.12} parent=0 // pred_fallthru
    _
  // Predicated region
  $region6: #{dqn_forward.12} parent=0 // pred_check
    _
  $region7: #{dqn_forward.12} parent=0 // pred_check_branch
    %11 = sbr.rel (0) target = $region9
  $region8: #{dqn_forward.12} parent=0 // pred_region
    _
  $region9: #{dqn_forward.12} parent=0 // pred_fallthru
    _
  // Predicated region
  $region10: #{dqn_forward.12} parent=0 // pred_check
    _
  $region11: #{dqn_forward.12} parent=0 // pred_check_branch
    %13 = sbr.rel (0) target = $region13
  $region12: #{dqn_forward.12} parent=0 // pred_region
    _
  $region13: #{dqn_forward.12} parent=0 // pred_fallthru
    _
  %v14 = vld [vmem:[%s0] sm:$0xff]
  %v15 = vld [vmem:[%s1] sm:$0x1]
  %v17 = vperm.slane %v15, 0
  %v19 = vmul.f32 %v14, %v17
  %v20 = vld [vmem:[%s2] sm:$0x1]
  %v22 = vperm.slane %v20, 0
  %v24 = vadd.f32 %v19, %v22
  %v25 = vmax.f32 %v24, 0.0
  %26 = vst [vmem:[%s3] sm:$0xff] %v25
  // Predicated region
  $region14: #{dqn_forward.12} parent=0 // pred_check
    _
  $region15: #{dqn_forward.12} parent=0 // pred_check_branch
    %28 = sbr.rel (0) target = $region17
  $region16: #{dqn_forward.12} parent=0 // pred_region
    _
  $region17: #{dqn_forward.12} parent=0 // pred_fallthru
    _
  // Predicated region
  $region18: #{dqn_forward.12} parent=0 // pred_check
    _
  $region19: #{dqn_forward.12} parent=0 // pred_check_branch
    %30 = sbr.rel (0) target = $region21
  $region20: #{dqn_forward.12} parent=0 // pred_region
    _
  $region21: #{dqn_forward.12} parent=0 // pred_fallthru
    _

// kernel: dqn_forward.11
$region0: #{dqn_forward.11}
  #allocation0 [shape = 'u32[]', space=smem, size = 0x4, offset = 0x4, fixed_abs, tag = 'smem constant byte address 0x4 - core index']
  #allocation1 [shape = 'u32[72,128]{1,0:T(1,128)}', space=vmem, size = 0x9000, scoped, tag = 'internal scratch']
  %s0 = inlined_call_operand.vmem [shape: f32[8,800], index: 0, kind: input, shape index: {}]
  %s1 = inlined_call_operand.vmem [shape: f32[800,128], index: 1, kind: input, shape index: {}]
  %s2 = inlined_call_operand.vmem [shape: f32[8,128], index: 2, kind: output, shape index: {0}]
  %s3 = inlined_call_operand.vmem [shape: f32[8,128], index: 3, kind: output, shape index: {1}]
  %4 = xla_tuple %s2, %s3
  %s5 = sld [smem:[#allocation0]]
  $region30: #{dqn_forward.11} parent=0
    _
  %s7 = ssub.s32 1, %s5
  %s8 = scalar_select 0, %s7, %s5
  // Predicated region
  $region2: #{dqn_forward.11} parent=0 // pred_check
    _
  $region3: #{dqn_forward.11} parent=0 // pred_check_branch
    %10 = sbr.rel (0) target = $region5
  $region4: #{dqn_forward.11} parent=0 // pred_region
    _
  $region5: #{dqn_forward.11} parent=0 // pred_fallthru
    _
  // Predicated region
  $region6: #{dqn_forward.11} parent=0 // pred_check
    _
  $region7: #{dqn_forward.11} parent=0 // pred_check_branch
    %12 = sbr.rel (0) target = $region9
  $region8: #{dqn_forward.11} parent=0 // pred_region
    _
  $region9: #{dqn_forward.11} parent=0 // pred_fallthru
    _
  %v13 = vld [vmem:[%s0] sm:$0xff]
  %v14 = vld [vmem:[%s0 + $0x8] sm:$0xff]
  %v15 = vld [vmem:[%s0 + $0x10] sm:$0xff]
  %v16 = vld [vmem:[%s0 + $0x18] sm:$0xff]
  %v17 = vld [vmem:[%s0 + $0x20] sm:$0xff]
  %v18 = vld [vmem:[%s0 + $0x28] sm:$0xff]
  %v19 = vld [vmem:[%s0 + $0x30] sm:$0xff]
  %v20 = vld [vmem:[%s1] sm:$0xff]
  %v21 = vld [vmem:[%s1 + $0x8] sm:$0xff]
  %v22 = vld [vmem:[%s1 + $0x10] sm:$0xff]
  %v23 = vld [vmem:[%s1 + $0x18] sm:$0xff]
  %v24 = vld [vmem:[%s1 + $0x20] sm:$0xff]
  %v25 = vld [vmem:[%s1 + $0x28] sm:$0xff]
  %v26 = vld [vmem:[%s1 + $0x30] sm:$0xff]
  %v27 = vld [vmem:[%s1 + $0x38] sm:$0xff]
  %v28 = vld [vmem:[%s1 + $0x40] sm:$0xff]
  %v29 = vld [vmem:[%s1 + $0x48] sm:$0xff]
  %v30 = vld [vmem:[%s1 + $0x50] sm:$0xff]
  %v31 = vld [vmem:[%s1 + $0x58] sm:$0xff]
  %v32 = vld [vmem:[%s1 + $0x60] sm:$0xff]
  %v33 = vld [vmem:[%s1 + $0x68] sm:$0xff]
  %v34 = vld [vmem:[%s1 + $0x70] sm:$0xff]
  %v35 = vld [vmem:[%s1 + $0x78] sm:$0xff]
  %v36 = vld [vmem:[%s1 + $0x80] sm:$0xff]
  %v37 = vld [vmem:[%s1 + $0x88] sm:$0xff]
  %v38 = vld [vmem:[%s1 + $0x90] sm:$0xff]
  %v39 = vld [vmem:[%s1 + $0x98] sm:$0xff]
  %v40 = vld [vmem:[%s1 + $0xa0] sm:$0xff]
  %v41 = vld [vmem:[%s1 + $0xa8] sm:$0xff]
  %v42 = vld [vmem:[%s1 + $0xb0] sm:$0xff]
  %v43 = vld [vmem:[%s1 + $0xb8] sm:$0xff]
  %v44 = vld [vmem:[%s1 + $0xc0] sm:$0xff]
  %v45 = vld [vmem:[%s1 + $0xc8] sm:$0xff]
  %v46 = vld [vmem:[%s1 + $0xd0] sm:$0xff]
  %v47 = vld [vmem:[%s1 + $0xd8] sm:$0xff]
  %v48 = vld [vmem:[%s1 + $0xe0] sm:$0xff]
  %v49 = vld [vmem:[%s1 + $0xe8] sm:$0xff]
  %v50 = vld [vmem:[%s1 + $0xf0] sm:$0xff]
  %v51 = vld [vmem:[%s1 + $0xf8] sm:$0xff]
  %v52 = vld [vmem:[%s1 + $0x100] sm:$0xff]
  %v53 = vld [vmem:[%s1 + $0x108] sm:$0xff]
  %v54 = vld [vmem:[%s1 + $0x110] sm:$0xff]
  %v55 = vld [vmem:[%s1 + $0x118] sm:$0xff]
  %v56 = vld [vmem:[%s1 + $0x120] sm:$0xff]
  %v57 = vld [vmem:[%s1 + $0x128] sm:$0xff]
  %v58 = vld [vmem:[%s1 + $0x130] sm:$0xff]
  %v59 = vld [vmem:[%s1 + $0x138] sm:$0xff]
  %v60 = vld [vmem:[%s1 + $0x140] sm:$0xff]
  %v61 = vld [vmem:[%s1 + $0x148] sm:$0xff]
  %v62 = vld [vmem:[%s1 + $0x150] sm:$0xff]
  %v63 = vld [vmem:[%s1 + $0x158] sm:$0xff]
  %v64 = vld [vmem:[%s1 + $0x160] sm:$0xff]
  %v65 = vld [vmem:[%s1 + $0x168] sm:$0xff]
  %v66 = vld [vmem:[%s1 + $0x170] sm:$0xff]
  %v67 = vld [vmem:[%s1 + $0x178] sm:$0xff]
  %v68 = vld [vmem:[%s1 + $0x180] sm:$0xff]
  %v69 = vld [vmem:[%s1 + $0x188] sm:$0xff]
  %v70 = vld [vmem:[%s1 + $0x190] sm:$0xff]
  %v71 = vld [vmem:[%s1 + $0x198] sm:$0xff]
  %v72 = vld [vmem:[%s1 + $0x1a0] sm:$0xff]
  %v73 = vld [vmem:[%s1 + $0x1a8] sm:$0xff]
  %v74 = vld [vmem:[%s1 + $0x1b0] sm:$0xff]
  %v75 = vld [vmem:[%s1 + $0x1b8] sm:$0xff]
  %v76 = vld [vmem:[%s1 + $0x1c0] sm:$0xff]
  %v77 = vld [vmem:[%s1 + $0x1c8] sm:$0xff]
  %v78 = vld [vmem:[%s1 + $0x1d0] sm:$0xff]
  %v79 = vld [vmem:[%s1 + $0x1d8] sm:$0xff]
  %v80 = vld [vmem:[%s1 + $0x1e0] sm:$0xff]
  %v81 = vld [vmem:[%s1 + $0x1e8] sm:$0xff]
  %v82 = vld [vmem:[%s1 + $0x1f0] sm:$0xff]
  %v83 = vld [vmem:[%s1 + $0x1f8] sm:$0xff]
  %v84 = vld [vmem:[%s1 + $0x200] sm:$0xff]
  %v85 = vld [vmem:[%s1 + $0x208] sm:$0xff]
  %v86 = vld [vmem:[%s1 + $0x210] sm:$0xff]
  %v87 = vld [vmem:[%s1 + $0x218] sm:$0xff]
  %v88 = vld [vmem:[%s1 + $0x220] sm:$0xff]
  %v89 = vld [vmem:[%s1 + $0x228] sm:$0xff]
  %v90 = vld [vmem:[%s1 + $0x230] sm:$0xff]
  %v91 = vld [vmem:[%s1 + $0x238] sm:$0xff]
  %v92 = vld [vmem:[%s1 + $0x240] sm:$0xff]
  %v93 = vld [vmem:[%s1 + $0x248] sm:$0xff]
  %v94 = vld [vmem:[%s1 + $0x250] sm:$0xff]
  %v95 = vld [vmem:[%s1 + $0x258] sm:$0xff]
  %v96 = vld [vmem:[%s1 + $0x260] sm:$0xff]
  %v97 = vld [vmem:[%s1 + $0x268] sm:$0xff]
  %v98 = vld [vmem:[%s1 + $0x270] sm:$0xff]
  %v99 = vld [vmem:[%s1 + $0x278] sm:$0xff]
  %v100 = vld [vmem:[%s1 + $0x280] sm:$0xff]
  %v101 = vld [vmem:[%s1 + $0x288] sm:$0xff]
  %v102 = vld [vmem:[%s1 + $0x290] sm:$0xff]
  %v103 = vld [vmem:[%s1 + $0x298] sm:$0xff]
  %v104 = vld [vmem:[%s1 + $0x2a0] sm:$0xff]
  %v105 = vld [vmem:[%s1 + $0x2a8] sm:$0xff]
  %v106 = vld [vmem:[%s1 + $0x2b0] sm:$0xff]
  %v107 = vld [vmem:[%s1 + $0x2b8] sm:$0xff]
  %v108 = vld [vmem:[%s1 + $0x2c0] sm:$0xff]
  %v109 = vld [vmem:[%s1 + $0x2c8] sm:$0xff]
  %v110 = vld [vmem:[%s1 + $0x2d0] sm:$0xff]
  %v111 = vld [vmem:[%s1 + $0x2d8] sm:$0xff]
  %v112 = vld [vmem:[%s1 + $0x2e0] sm:$0xff]
  %v113 = vld [vmem:[%s1 + $0x2e8] sm:$0xff]
  %v114 = vld [vmem:[%s1 + $0x2f0] sm:$0xff]
  %v115 = vld [vmem:[%s1 + $0x2f8] sm:$0xff]
  %v116 = vld [vmem:[%s1 + $0x300] sm:$0xff]
  %v117 = vld [vmem:[%s1 + $0x308] sm:$0xff]
  %v118 = vld [vmem:[%s1 + $0x310] sm:$0xff]
  %v119 = vld [vmem:[%s1 + $0x318] sm:$0xff]
  %vm120 = vcmask 261120
  %v122 = vsel %vm120, %v19, 0
  %124 = vmatpush.msra.mxu0 %v35
  %125 = vmatpush.msra.mxu0 %v34
  %126 = vmatpush.msra.mxu0 %v33
  %127 = vmatpush.msra.mxu0 %v32
  %128 = vmatpush.msra.mxu0 %v31
  %129 = vmatpush.msra.mxu0 %v30
  %130 = vmatpush.msra.mxu0 %v29
  %131 = vmatpush.msra.mxu0 %v28
  %132 = vmatpush.msra.mxu0 %v27
  %133 = vmatpush.msra.mxu0 %v26
  %134 = vmatpush.msra.mxu0 %v25
  %135 = vmatpush.msra.mxu0 %v24
  %136 = vmatpush.msra.mxu0 %v23
  %137 = vmatpush.msra.mxu0 %v22
  %138 = vmatpush.msra.mxu0 %v21
  %139 = vmatpush.msra.mxu0 %v20
  %140 = vmatmul.f32.gmra.mxu0 %v13
  %v141 = vpop.f32.mrf.mxu0
  %v142 = vadd.f32 0.0, %v141
  %143 = vdwg.mxu0
  %144 = vmatpush.msra.mxu0 %v51
  %145 = vmatpush.msra.mxu0 %v50
  %146 = vmatpush.msra.mxu0 %v49
  %147 = vmatpush.msra.mxu0 %v48
  %148 = vmatpush.msra.mxu0 %v47
  %149 = vmatpush.msra.mxu0 %v46
  %150 = vmatpush.msra.mxu0 %v45
  %151 = vmatpush.msra.mxu0 %v44
  %152 = vmatpush.msra.mxu0 %v43
  %153 = vmatpush.msra.mxu0 %v42
  %154 = vmatpush.msra.mxu0 %v41
  %155 = vmatpush.msra.mxu0 %v40
  %156 = vmatpush.msra.mxu0 %v39
  %157 = vmatpush.msra.mxu0 %v38
  %158 = vmatpush.msra.mxu0 %v37
  %159 = vmatpush.msra.mxu0 %v36
  %160 = vmatmul.f32.gmra.mxu0 %v14
  %v161 = vpop.f32.mrf.mxu0
  %v162 = vadd.f32 %v142, %v161
  %163 = vdwg.mxu0
  %164 = vmatpush.msra.mxu0 %v67
  %165 = vmatpush.msra.mxu0 %v66
  %166 = vmatpush.msra.mxu0 %v65
  %167 = vmatpush.msra.mxu0 %v64
  %168 = vmatpush.msra.mxu0 %v63
  %169 = vmatpush.msra.mxu0 %v62
  %170 = vmatpush.msra.mxu0 %v61
  %171 = vmatpush.msra.mxu0 %v60
  %172 = vmatpush.msra.mxu0 %v59
  %173 = vmatpush.msra.mxu0 %v58
  %174 = vmatpush.msra.mxu0 %v57
  %175 = vmatpush.msra.mxu0 %v56
  %176 = vmatpush.msra.mxu0 %v55
  %177 = vmatpush.msra.mxu0 %v54
  %178 = vmatpush.msra.mxu0 %v53
  %179 = vmatpush.msra.mxu0 %v52
  %180 = vmatmul.f32.gmra.mxu0 %v15
  %v181 = vpop.f32.mrf.mxu0
  %v182 = vadd.f32 %v162, %v181
  %183 = vdwg.mxu0
  %184 = vmatpush.msra.mxu0 %v83
  %185 = vmatpush.msra.mxu0 %v82
  %186 = vmatpush.msra.mxu0 %v81
  %187 = vmatpush.msra.mxu0 %v80
  %188 = vmatpush.msra.mxu0 %v79
  %189 = vmatpush.msra.mxu0 %v78
  %190 = vmatpush.msra.mxu0 %v77
  %191 = vmatpush.msra.mxu0 %v76
  %192 = vmatpush.msra.mxu0 %v75
  %193 = vmatpush.msra.mxu0 %v74
  %194 = vmatpush.msra.mxu0 %v73
  %195 = vmatpush.msra.mxu0 %v72
  %196 = vmatpush.msra.mxu0 %v71
  %197 = vmatpush.msra.mxu0 %v70
  %198 = vmatpush.msra.mxu0 %v69
  %199 = vmatpush.msra.mxu0 %v68
  %200 = vmatmul.f32.gmra.mxu0 %v16
  %v201 = vpop.f32.mrf.mxu0
  %v202 = vadd.f32 %v182, %v201
  %203 = vdwg.mxu0
  %204 = vmatpush.msra.mxu0 %v99
  %205 = vmatpush.msra.mxu0 %v98
  %206 = vmatpush.msra.mxu0 %v97
  %207 = vmatpush.msra.mxu0 %v96
  %208 = vmatpush.msra.mxu0 %v95
  %209 = vmatpush.msra.mxu0 %v94
  %210 = vmatpush.msra.mxu0 %v93
  %211 = vmatpush.msra.mxu0 %v92
  %212 = vmatpush.msra.mxu0 %v91
  %213 = vmatpush.msra.mxu0 %v90
  %214 = vmatpush.msra.mxu0 %v89
  %215 = vmatpush.msra.mxu0 %v88
  %216 = vmatpush.msra.mxu0 %v87
  %217 = vmatpush.msra.mxu0 %v86
  %218 = vmatpush.msra.mxu0 %v85
  %219 = vmatpush.msra.mxu0 %v84
  %220 = vmatmul.f32.gmra.mxu0 %v17
  %v221 = vpop.f32.mrf.mxu0
  %v222 = vadd.f32 %v202, %v221
  %223 = vdwg.mxu0
  %224 = vmatpush.msra.mxu0 %v115
  %225 = vmatpush.msra.mxu0 %v114
  %226 = vmatpush.msra.mxu0 %v113
  %227 = vmatpush.msra.mxu0 %v112
  %228 = vmatpush.msra.mxu0 %v111
  %229 = vmatpush.msra.mxu0 %v110
  %230 = vmatpush.msra.mxu0 %v109
  %231 = vmatpush.msra.mxu0 %v108
  %232 = vmatpush.msra.mxu0 %v107
  %233 = vmatpush.msra.mxu0 %v106
  %234 = vmatpush.msra.mxu0 %v105
  %235 = vmatpush.msra.mxu0 %v104
  %236 = vmatpush.msra.mxu0 %v103
  %237 = vmatpush.msra.mxu0 %v102
  %238 = vmatpush.msra.mxu0 %v101
  %239 = vmatpush.msra.mxu0 %v100
  %240 = vmatmul.f32.gmra.mxu0 %v18
  %v241 = vpop.f32.mrf.mxu0
  %v242 = vadd.f32 %v222, %v241
  %243 = vdwg.mxu0
  %244 = vmatpush.msra.mxu0 0.0
  %245 = vmatpush.msra.mxu0 0.0
  %246 = vmatpush.msra.mxu0 0.0
  %247 = vmatpush.msra.mxu0 0.0
  %248 = vmatpush.msra.mxu0 0.0
  %249 = vmatpush.msra.mxu0 0.0
  %250 = vmatpush.msra.mxu0 0.0
  %251 = vmatpush.msra.mxu0 0.0
  %252 = vmatpush.msra.mxu0 0.0
  %253 = vmatpush.msra.mxu0 0.0
  %254 = vmatpush.msra.mxu0 0.0
  %255 = vmatpush.msra.mxu0 0.0
  %256 = vmatpush.msra.mxu0 %v119
  %257 = vmatpush.msra.mxu0 %v118
  %258 = vmatpush.msra.mxu0 %v117
  %259 = vmatpush.msra.mxu0 %v116
  %260 = vmatmul.f32.gmra.mxu0 %v122
  %v261 = vpop.f32.mrf.mxu0
  %v262 = vadd.f32 %v242, %v261
  %263 = vdwg.mxu0
  %264 = vst [vmem:[%s2] sm:$0xff] %v262
  %p265 = scmp.eq.s32.totalorder 0, 0
  // Predicated region
  $region10: #{dqn_forward.11} parent=0 // pred_check
    %p266 = pneg %p265
  $region11: #{dqn_forward.11} parent=0 // pred_check_branch
    %268 = sbr.rel (%p266) target = $region13
  $region12: #{dqn_forward.11} parent=0 // pred_region
    %269 = vst [vmem:[%s3] sm:$0xff] 0.0
  $region13: #{dqn_forward.11} parent=0 // pred_fallthru
    _
  %v270 = vld [vmem:[%s3] sm:$0x1]
  %v271 = vrot.slane %v262, 4
  %v272 = vadd.f32 %v262, %v271
  %v273 = vrot.slane %v272, 2
  %v274 = vadd.f32 %v272, %v273
  %v275 = vrot.slane %v274, 1
  %v276 = vadd.f32 %v274, %v275
  %v277 = vadd.f32 %v270, %v276
  %278 = vst [vmem:[%s3] sm:$0x1] %v277
  %v279 = vld [vmem:[%s3 + $0x1] sm:$0x1]
  %v280 = vmul.f32 %v262, %v262
  %v281 = vrot.slane %v280, 4
  %v282 = vadd.f32 %v280, %v281
  %v283 = vrot.slane %v282, 2
  %v284 = vadd.f32 %v282, %v283
  %v285 = vrot.slane %v284, 1
  %v286 = vadd.f32 %v284, %v285
  %v287 = vadd.f32 %v279, %v286
  %288 = vst [vmem:[%s3 + $0x1] sm:$0x1] %v287
  // Predicated region
  $region14: #{dqn_forward.11} parent=0 // pred_check
    _
  $region15: #{dqn_forward.11} parent=0 // pred_check_branch
    %290 = sbr.rel (0) target = $region17
  $region16: #{dqn_forward.11} parent=0 // pred_region
    _
  $region17: #{dqn_forward.11} parent=0 // pred_fallthru
    _
  // Predicated region
  $region18: #{dqn_forward.11} parent=0 // pred_check
    _
  $region19: #{dqn_forward.11} parent=0 // pred_check_branch
    %292 = sbr.rel (0) target = $region21
  $region20: #{dqn_forward.11} parent=0 // pred_region
    _
  $region21: #{dqn_forward.11} parent=0 // pred_fallthru
    _
  // Predicated region
  $region22: #{dqn_forward.11} parent=0 // pred_check
    _
  $region23: #{dqn_forward.11} parent=0 // pred_check_branch
    %294 = sbr.rel (0) target = $region25
  $region24: #{dqn_forward.11} parent=0 // pred_region
    _
  $region25: #{dqn_forward.11} parent=0 // pred_fallthru
    _
  // Predicated region
  $region26: #{dqn_forward.11} parent=0 // pred_check
    _
  $region27: #{dqn_forward.11} parent=0 // pred_check_branch
    %296 = sbr.rel (0) target = $region29
  $region28: #{dqn_forward.11} parent=0 // pred_region
    _
  $region29: #{dqn_forward.11} parent=0 // pred_fallthru
    _

// kernel: dqn_forward.13
$region0: #{dqn_forward.13}
  #allocation0 [shape = 'u32[]', space=smem, size = 0x4, offset = 0x4, fixed_abs, tag = 'smem constant byte address 0x4 - core index']
  #allocation1 [shape = 'u32[72,128]{1,0:T(1,128)}', space=vmem, size = 0x9000, scoped, tag = 'internal scratch']
  %s0 = inlined_call_operand.vmem [shape: f32[8,64], index: 0, kind: input, shape index: {}]
  %s1 = inlined_call_operand.vmem [shape: f32[64,128], index: 1, kind: input, shape index: {}]
  %s2 = inlined_call_operand.vmem [shape: f32[1,128], index: 2, kind: input, shape index: {}]
  %s3 = inlined_call_operand.vmem [shape: f32[8,128], index: 3, kind: output, shape index: {}]
  %s4 = sld [smem:[#allocation0]]
  $region22: #{dqn_forward.13} parent=0
    _
  %s6 = ssub.s32 1, %s4
  %s7 = scalar_select 0, %s6, %s4
  // Predicated region
  $region2: #{dqn_forward.13} parent=0 // pred_check
    _
  $region3: #{dqn_forward.13} parent=0 // pred_check_branch
    %9 = sbr.rel (0) target = $region5
  $region4: #{dqn_forward.13} parent=0 // pred_region
    _
  $region5: #{dqn_forward.13} parent=0 // pred_fallthru
    _
  // Predicated region
  $region6: #{dqn_forward.13} parent=0 // pred_check
    _
  $region7: #{dqn_forward.13} parent=0 // pred_check_branch
    %11 = sbr.rel (0) target = $region9
  $region8: #{dqn_forward.13} parent=0 // pred_region
    _
  $region9: #{dqn_forward.13} parent=0 // pred_fallthru
    _
  // Predicated region
  $region10: #{dqn_forward.13} parent=0 // pred_check
    _
  $region11: #{dqn_forward.13} parent=0 // pred_check_branch
    %13 = sbr.rel (0) target = $region13
  $region12: #{dqn_forward.13} parent=0 // pred_region
    _
  $region13: #{dqn_forward.13} parent=0 // pred_fallthru
    _
  %v14 = vld [vmem:[%s0] sm:$0xff]
  %v15 = vld [vmem:[%s1] sm:$0xff]
  %v16 = vld [vmem:[%s1 + $0x8] sm:$0xff]
  %v17 = vld [vmem:[%s1 + $0x10] sm:$0xff]
  %v18 = vld [vmem:[%s1 + $0x18] sm:$0xff]
  %v19 = vld [vmem:[%s1 + $0x20] sm:$0xff]
  %v20 = vld [vmem:[%s1 + $0x28] sm:$0xff]
  %v21 = vld [vmem:[%s1 + $0x30] sm:$0xff]
  %v22 = vld [vmem:[%s1 + $0x38] sm:$0xff]
  %v23 = vld [vmem:[%s2] sm:$0x1]
  %v25 = vperm.slane %v23, 0
  %vm27 = vcmask 523264
  %v29 = vsel %vm27, %v14, 0
  %31 = vmatpush.msra.mxu0 0.0
  %32 = vmatpush.msra.mxu0 0.0
  %33 = vmatpush.msra.mxu0 0.0
  %34 = vmatpush.msra.mxu0 0.0
  %35 = vmatpush.msra.mxu0 0.0
  %36 = vmatpush.msra.mxu0 0.0
  %37 = vmatpush.msra.mxu0 0.0
  %38 = vmatpush.msra.mxu0 0.0
  %39 = vmatpush.msra.mxu0 %v22
  %40 = vmatpush.msra.mxu0 %v21
  %41 = vmatpush.msra.mxu0 %v20
  %42 = vmatpush.msra.mxu0 %v19
  %43 = vmatpush.msra.mxu0 %v18
  %44 = vmatpush.msra.mxu0 %v17
  %45 = vmatpush.msra.mxu0 %v16
  %46 = vmatpush.msra.mxu0 %v15
  %47 = vmatmul.f32.gmra.mxu0 %v29
  %v48 = vpop.f32.mrf.mxu0
  %v49 = vadd.f32 %v25, %v48
  %50 = vdwg.mxu0
  %51 = vst [vmem:[%s3] sm:$0xff] %v49
  // Predicated region
  $region14: #{dqn_forward.13} parent=0 // pred_check
    _
  $region15: #{dqn_forward.13} parent=0 // pred_check_branch
    %53 = sbr.rel (0) target = $region17
  $region16: #{dqn_forward.13} parent=0 // pred_region
    _
  $region17: #{dqn_forward.13} parent=0 // pred_fallthru
    _
  // Predicated region
  $region18: #{dqn_forward.13} parent=0 // pred_check
    _
  $region19: #{dqn_forward.13} parent=0 // pred_check_branch
    %55 = sbr.rel (0) target = $region21
  $region20: #{dqn_forward.13} parent=0 // pred_region
    _
  $region21: #{dqn_forward.13} parent=0 // pred_fallthru
    _

</llo_original>
